<compile_context>
chip_gen: v6e
topology: v6e:2x2x1
jax: 0.10.0
libtpu: 0.0.40
codegen_flags: <defaults>
</compile_context>

<pallas_src>
import functools

import jax
import jax.numpy as jnp
from jax.experimental import pallas as pl
from jax.experimental.pallas import tpu as pltpu


def _round_up(n, m):
    return ((n + m - 1) // m) * m


def _pad_axis(a, axis, target):
    if a.shape[axis] == target:
        return a
    widths = [(0, 0)] * a.ndim
    widths[axis] = (0, target - a.shape[axis])
    return jnp.pad(a, widths)


def _influence_kernel(x_ref,                     # (TB, Lp, Mp) padded input motifs
                      ws_ref, bs_ref,            # (Mp, Cp), (1, Cp) sparse reprocessor
                      wqkv_ref,                  # (Cp, 3*Cp) fused Q/K/V projection
                      wsel_ref, bsel_ref,        # (Cp, Mp), (1, Mp) selector
                      attn_ref,                  # (TB, Lp, Lp) attention weights out
                      out_ref,                   # (TB, Lp, Mp) influence values out
                      av_ref,                    # scratch (TB, Lp, Cp)
                      *, seq_len, true_c):
    TB, Lp, Mp = x_ref.shape
    Cp = ws_ref.shape[1]

    # ---- sparse reprocessor: Linear(M -> C) over all TB*Lp rows at once ----
    x2d = x_ref[...].reshape(TB * Lp, Mp)
    h2d = jnp.dot(x2d, ws_ref[...], preferred_element_type=jnp.float32) + bs_ref[...]

    # ---- fused QKV projection: one (TB*Lp, Cp) x (Cp, 3Cp) matmul ----
    qkv = jnp.dot(h2d, wqkv_ref[...], preferred_element_type=jnp.float32)
    q = qkv[:, :Cp].reshape(TB, Lp, Cp)
    k = qkv[:, Cp:2 * Cp].reshape(TB, Lp, Cp)
    v = qkv[:, 2 * Cp:].reshape(TB, Lp, Cp)

    scale = 1.0 / (float(true_c) ** 0.5)          # true C, not padded Cp

    # Key-padding bias, hoisted out of the batch loop (only needed if L < Lp).
    if seq_len < Lp:
        key_valid = jax.lax.broadcasted_iota(jnp.int32, (1, Lp), 1) < seq_len
        key_bias = jnp.where(key_valid, 0.0, -1e30).astype(jnp.float32)   # (1, Lp)
    else:
        key_bias = None

    # ---- single-head self-attention per batch row (TB is small & static) ----
    for b in range(TB):
        # q @ k^T via dot_general contracting the last dims (no k.T relayout).
        scores = jax.lax.dot_general(
            q[b], k[b],
            dimension_numbers=(((1,), (1,)), ((), ())),
            preferred_element_type=jnp.float32) * scale                   # (Lp, Lp)
        if key_bias is not None:
            scores = scores + key_bias
        m = jnp.max(scores, axis=-1, keepdims=True)
        e = jnp.exp(scores - m)
        denom = jnp.sum(e, axis=-1, keepdims=True)
        attn = e * pl.reciprocal(denom, approx=True)                      # EUP slot
        attn_ref[b] = attn
        av_ref[b] = jnp.dot(attn, v[b], preferred_element_type=jnp.float32)

    # ---- residual + selector Linear(C -> M), one big lane-dense matmul/store ----
    lr2d = h2d + av_ref[...].reshape(TB * Lp, Cp)
    out2d = jnp.dot(lr2d, wsel_ref[...], preferred_element_type=jnp.float32) + bsel_ref[...]
    out_ref[...] = out2d.reshape(TB, Lp, Mp)


def influence_value_calculator(x, params, *, batch_tile=None):
    """x: (B, L, M) float32. Returns (attn_weights (B, L, L), output (B, L, M))."""
    B, L, M = x.shape
    C = params["ws"].shape[1]

    # Lane-dense padded sizes (every lane axis a multiple of 128).
    Lp = _round_up(L, 128)
    Mp = _round_up(M, 128)
    Cp = _round_up(C, 128)

    TB = B if batch_tile is None else batch_tile
    assert B % TB == 0, "batch_tile must divide batch size"
    nb = B // TB

    # Pad once here (in a real model the weights would be padded at init time).
    xp = _pad_axis(_pad_axis(x, 2, Mp), 1, Lp)
    ws = _pad_axis(_pad_axis(params["ws"], 0, Mp), 1, Cp)
    bs = _pad_axis(params["bs"], 1, Cp)
    wq = _pad_axis(_pad_axis(params["wq"], 0, Cp), 1, Cp)
    wk = _pad_axis(_pad_axis(params["wk"], 0, Cp), 1, Cp)
    wv = _pad_axis(_pad_axis(params["wv"], 0, Cp), 1, Cp)
    wqkv = jnp.concatenate([wq, wk, wv], axis=1)          # fused (Cp, 3*Cp)
    wsel = _pad_axis(_pad_axis(params["wsel"], 0, Cp), 1, Mp)
    bsel = _pad_axis(params["bsel"], 1, Mp)

    # Weight specs have constant index maps, so they are fetched once and kept
    # resident across the (small) grid.
    full = lambda shape: pl.BlockSpec(shape, lambda i: tuple(0 for _ in shape))

    kernel = functools.partial(_influence_kernel, seq_len=L, true_c=C)

    flops = 2 * B * (Lp * Mp * Cp + Lp * Cp * 3 * Cp + 2 * Lp * Lp * Cp + Lp * Cp * Mp)
    transcendentals = B * Lp * Lp
    bytes_accessed = 4 * (2 * B * Lp * Mp + B * Lp * Lp
                          + Mp * Cp + Cp + 3 * Cp * Cp + Cp * Mp + Mp)

    attn_p, out_p = pl.pallas_call(
        kernel,
        out_shape=(
            jax.ShapeDtypeStruct((B, Lp, Lp), jnp.float32),
            jax.ShapeDtypeStruct((B, Lp, Mp), jnp.float32),
        ),
        grid_spec=pltpu.PrefetchScalarGridSpec(
            num_scalar_prefetch=0,
            grid=(nb,),
            in_specs=[
                pl.BlockSpec((TB, Lp, Mp), lambda i: (i, 0, 0)),   # x (TB batches/step)
                full((Mp, Cp)),        # ws
                full((1, Cp)),         # bs
                full((Cp, 3 * Cp)),    # fused wqkv
                full((Cp, Mp)),        # wsel
                full((1, Mp)),         # bsel
            ],
            out_specs=[
                pl.BlockSpec((TB, Lp, Lp), lambda i: (i, 0, 0)),
                pl.BlockSpec((TB, Lp, Mp), lambda i: (i, 0, 0)),
            ],
            scratch_shapes=[pltpu.VMEM((TB, Lp, Cp), jnp.float32)],
        ),
        compiler_params=pltpu.CompilerParams(
            dimension_semantics=("parallel",)),
        cost_estimate=pl.CostEstimate(
            flops=flops,
            transcendentals=transcendentals,
            bytes_accessed=bytes_accessed),
    )(xp, ws, bs, wqkv, wsel, bsel)

    # Slice off the lane padding.
    return attn_p[:, :L, :L], out_p[:, :L, :M]


def _reference(x, p):
    h = jnp.einsum("blm,mc->blc", x, p["ws"]) + p["bs"][0]
    q = jnp.einsum("blc,cd->bld", h, p["wq"])
    k = jnp.einsum("blc,cd->bld", h, p["wk"])
    v = jnp.einsum("blc,cd->bld", h, p["wv"])
    scores = jnp.einsum("bld,bkd->blk", q, k) / jnp.sqrt(jnp.float32(q.shape[-1]))
    attn = jax.nn.softmax(scores, axis=-1)
    lr_out = h + jnp.einsum("blk,bkd->bld", attn, v)
    out = jnp.einsum("blc,cm->blm", lr_out, p["wsel"]) + p["bsel"][0]
    return attn, out


def make_params(key, num_motifs, intermediate_channels):
    M, C = num_motifs, intermediate_channels
    ks = jax.random.split(key, 8)
    s = lambda k, shape, scale: (jax.random.normal(k, shape, jnp.float32) * scale)
    return dict(
        ws=s(ks[0], (M, C), 1.0 / jnp.sqrt(M)),
        bs=s(ks[1], (1, C), 0.02),
        wq=s(ks[2], (C, C), 1.0 / jnp.sqrt(C)),
        wk=s(ks[3], (C, C), 1.0 / jnp.sqrt(C)),
        wv=s(ks[4], (C, C), 1.0 / jnp.sqrt(C)),
        wsel=s(ks[5], (C, M), 1.0 / jnp.sqrt(C)),
        bsel=s(ks[6], (1, M), 0.02),
    )


if __name__ == "__main__":
    B, L = 2, 16               # batch, seq_len
    num_motifs = 8             # input/output channels
    intermediate_channels = 16 # post-sparse hidden width

    key = jax.random.PRNGKey(0)
    kx, kp = jax.random.split(key)
    x = jax.random.normal(kx, (B, L, num_motifs), jnp.float32)
    params = make_params(kp, num_motifs, intermediate_channels)

    attn, out = jax.block_until_ready(influence_value_calculator(x, params))

    attn_exp, out_exp = _reference(x, params)
    assert attn.shape == (B, L, L) and out.shape == (B, L, num_motifs)
    # Tolerances are relaxed slightly vs 1e-5 because the softmax denominator
    # uses the approximate EUP reciprocal (pl.reciprocal(approx=True)).
    assert jnp.allclose(attn, attn_exp, atol=5e-3, rtol=5e-3)
    assert jnp.allclose(out, out_exp, atol=2e-2, rtol=2e-2)

    print("KERNEL_OK")
</pallas_src>

<mosaic_0001>
module attributes {stable_mosaic.version = 11 : i64} {
  func.func @_influence_kernel(%arg0: i32, %arg1: memref<2x128x128xf32, #tpu.memory_space<vmem>>, %arg2: memref<128x128xf32, #tpu.memory_space<vmem>>, %arg3: memref<1x128xf32, #tpu.memory_space<vmem>>, %arg4: memref<128x384xf32, #tpu.memory_space<vmem>>, %arg5: memref<128x128xf32, #tpu.memory_space<vmem>>, %arg6: memref<1x128xf32, #tpu.memory_space<vmem>>, %arg7: memref<2x128x128xf32, #tpu.memory_space<vmem>>, %arg8: memref<2x128x128xf32, #tpu.memory_space<vmem>>, %arg9: memref<2x128x128xf32, #tpu.memory_space<vmem>>) attributes {dimension_semantics = [#tpu.dimension_semantics<parallel>], iteration_bounds = array<i64: 1>, scalar_prefetch = 0 : i64, scratch_operands = 1 : i64, tpu.core_type = #tpu.core_type<tc>, window_params = [{transform_indices = @transform_0, window_bounds = array<i64: 2, 128, 128>}, {pipeline_mode = #tpu.pipeline_mode<synchronous>, transform_indices = @transform_1, window_bounds = array<i64: 128, 128>}, {pipeline_mode = #tpu.pipeline_mode<synchronous>, transform_indices = @transform_2, window_bounds = array<i64: 1, 128>}, {pipeline_mode = #tpu.pipeline_mode<synchronous>, transform_indices = @transform_3, window_bounds = array<i64: 128, 384>}, {pipeline_mode = #tpu.pipeline_mode<synchronous>, transform_indices = @transform_4, window_bounds = array<i64: 128, 128>}, {pipeline_mode = #tpu.pipeline_mode<synchronous>, transform_indices = @transform_5, window_bounds = array<i64: 1, 128>}, {transform_indices = @transform_6, window_bounds = array<i64: 2, 128, 128>}, {transform_indices = @transform_7, window_bounds = array<i64: 2, 128, 128>}]} {
    %c0 = arith.constant 0 : index
    %c0_0 = arith.constant 0 : index
    %c0_1 = arith.constant 0 : index
    %0 = vector.load %arg1[%c0, %c0_0, %c0_1] : memref<2x128x128xf32, #tpu.memory_space<vmem>>, vector<2x128x128xf32>
    %1 = vector.shape_cast %0 : vector<2x128x128xf32> to vector<256x128xf32>
    %c0_2 = arith.constant 0 : index
    %c0_3 = arith.constant 0 : index
    %2 = vector.load %arg2[%c0_2, %c0_3] : memref<128x128xf32, #tpu.memory_space<vmem>>, vector<128x128xf32>
    %cst = arith.constant dense<0.000000e+00> : vector<256x128xf32>
    %3 = tpu.matmul %1, %2, %cst {dimension_numbers = #tpu.dot_dimension_numbers<[1], [0], [0], [1], [0, 0, 1, 1], [], []>} : vector<256x128xf32>, vector<128x128xf32>, vector<256x128xf32> -> vector<256x128xf32>
    %c0_4 = arith.constant 0 : index
    %c0_5 = arith.constant 0 : index
    %4 = vector.load %arg3[%c0_4, %c0_5] : memref<1x128xf32, #tpu.memory_space<vmem>>, vector<1x128xf32>
    %5 = vector.broadcast %4 : vector<1x128xf32> to vector<256x128xf32>
    %6 = arith.addf %3, %5 : vector<256x128xf32>
    %c0_6 = arith.constant 0 : index
    %c0_7 = arith.constant 0 : index
    %7 = vector.load %arg4[%c0_6, %c0_7] : memref<128x384xf32, #tpu.memory_space<vmem>>, vector<128x384xf32>
    %cst_8 = arith.constant dense<0.000000e+00> : vector<256x384xf32>
    %8 = tpu.matmul %6, %7, %cst_8 {dimension_numbers = #tpu.dot_dimension_numbers<[1], [0], [0], [1], [0, 0, 1, 1], [], []>} : vector<256x128xf32>, vector<128x384xf32>, vector<256x384xf32> -> vector<256x384xf32>
    %9 = vector.extract_strided_slice %8 {offsets = [0, 0], sizes = [256, 128], strides = [1, 1]} : vector<256x384xf32> to vector<256x128xf32>
    %10 = vector.shape_cast %9 : vector<256x128xf32> to vector<2x128x128xf32>
    %11 = vector.extract_strided_slice %8 {offsets = [0, 128], sizes = [256, 128], strides = [1, 1]} : vector<256x384xf32> to vector<256x128xf32>
    %12 = vector.shape_cast %11 : vector<256x128xf32> to vector<2x128x128xf32>
    %13 = vector.extract_strided_slice %8 {offsets = [0, 256], sizes = [256, 128], strides = [1, 1]} : vector<256x384xf32> to vector<256x128xf32>
    %14 = vector.shape_cast %13 : vector<256x128xf32> to vector<2x128x128xf32>
    %15 = tpu.iota {dimensions = array<i32: 1>} : vector<1x128xi32>
    %c16_i32 = arith.constant 16 : i32
    %16 = vector.broadcast %c16_i32 : i32 to vector<1x128xi32>
    %17 = arith.cmpi slt, %15, %16 : vector<1x128xi32>
    %cst_9 = arith.constant 0.000000e+00 : f32
    %cst_10 = arith.constant -1.000000e+30 : f32
    %18 = vector.broadcast %cst_9 : f32 to vector<1x128xf32>
    %19 = vector.broadcast %cst_10 : f32 to vector<1x128xf32>
    %20 = arith.select %17, %18, %19 : vector<1x128xi1>, vector<1x128xf32>
    %21 = vector.extract_strided_slice %10 {offsets = [0, 0, 0], sizes = [1, 128, 128], strides = [1, 1, 1]} : vector<2x128x128xf32> to vector<1x128x128xf32>
    %22 = vector.shape_cast %21 : vector<1x128x128xf32> to vector<128x128xf32>
    %23 = vector.extract_strided_slice %12 {offsets = [0, 0, 0], sizes = [1, 128, 128], strides = [1, 1, 1]} : vector<2x128x128xf32> to vector<1x128x128xf32>
    %24 = vector.shape_cast %23 : vector<1x128x128xf32> to vector<128x128xf32>
    %cst_11 = arith.constant dense<0.000000e+00> : vector<128x128xf32>
    %25 = tpu.matmul %22, %24, %cst_11 {dimension_numbers = #tpu.dot_dimension_numbers<[1], [1], [0], [0], [0, 0, 1, 0], [], []>} : vector<128x128xf32>, vector<128x128xf32>, vector<128x128xf32> -> vector<128x128xf32>
    %cst_12 = arith.constant 2.500000e-01 : f32
    %26 = vector.broadcast %cst_12 : f32 to vector<128x128xf32>
    %27 = arith.mulf %25, %26 : vector<128x128xf32>
    %28 = vector.broadcast %20 : vector<1x128xf32> to vector<128x128xf32>
    %29 = arith.addf %27, %28 : vector<128x128xf32>
    %cst_13 = arith.constant dense<0xFF800000> : vector<128xf32>
    %30 = vector.multi_reduction <maximumf>, %29, %cst_13 [1] : vector<128x128xf32> to vector<128xf32>
    %31 = vector.shape_cast %30 : vector<128xf32> to vector<128x1xf32>
    %32 = vector.broadcast %31 : vector<128x1xf32> to vector<128x128xf32>
    %33 = arith.subf %29, %32 : vector<128x128xf32>
    %34 = math.exp %33 : vector<128x128xf32>
    %cst_14 = arith.constant dense<0.000000e+00> : vector<128xf32>
    %35 = vector.multi_reduction <add>, %34, %cst_14 [1] : vector<128x128xf32> to vector<128xf32>
    %36 = vector.shape_cast %35 : vector<128xf32> to vector<128x1xf32>
    %37 = tpu.reciprocal %36 {approx = true} : vector<128x1xf32> -> vector<128x1xf32>
    %38 = vector.broadcast %37 : vector<128x1xf32> to vector<128x128xf32>
    %39 = arith.mulf %34, %38 : vector<128x128xf32>
    %c0_15 = arith.constant 0 : index
    %c0_16 = arith.constant 0 : index
    %c0_17 = arith.constant 0 : index
    %40 = vector.load %arg7[%c0_15, %c0_16, %c0_17] : memref<2x128x128xf32, #tpu.memory_space<vmem>>, vector<1x128x128xf32>
    %41 = vector.shape_cast %40 : vector<1x128x128xf32> to vector<128x128xf32>
    %42 = vector.shape_cast %39 : vector<128x128xf32> to vector<1x128x128xf32>
    tpu.vector_store %arg7[%c0_15, %c0_16, %c0_17], %42 {strides = array<i32>} : memref<2x128x128xf32, #tpu.memory_space<vmem>>, vector<1x128x128xf32>,
    %43 = vector.extract_strided_slice %14 {offsets = [0, 0, 0], sizes = [1, 128, 128], strides = [1, 1, 1]} : vector<2x128x128xf32> to vector<1x128x128xf32>
    %44 = vector.shape_cast %43 : vector<1x128x128xf32> to vector<128x128xf32>
    %cst_18 = arith.constant dense<0.000000e+00> : vector<128x128xf32>
    %45 = tpu.matmul %39, %44, %cst_18 {dimension_numbers = #tpu.dot_dimension_numbers<[1], [0], [0], [1], [0, 0, 1, 1], [], []>} : vector<128x128xf32>, vector<128x128xf32>, vector<128x128xf32> -> vector<128x128xf32>
    %c0_19 = arith.constant 0 : index
    %c0_20 = arith.constant 0 : index
    %c0_21 = arith.constant 0 : index
    %46 = vector.load %arg9[%c0_19, %c0_20, %c0_21] : memref<2x128x128xf32, #tpu.memory_space<vmem>>, vector<1x128x128xf32>
    %47 = vector.shape_cast %46 : vector<1x128x128xf32> to vector<128x128xf32>
    %48 = vector.shape_cast %45 : vector<128x128xf32> to vector<1x128x128xf32>
    tpu.vector_store %arg9[%c0_19, %c0_20, %c0_21], %48 {strides = array<i32>} : memref<2x128x128xf32, #tpu.memory_space<vmem>>, vector<1x128x128xf32>,
    %49 = vector.extract_strided_slice %10 {offsets = [1, 0, 0], sizes = [1, 128, 128], strides = [1, 1, 1]} : vector<2x128x128xf32> to vector<1x128x128xf32>
    %50 = vector.shape_cast %49 : vector<1x128x128xf32> to vector<128x128xf32>
    %51 = vector.extract_strided_slice %12 {offsets = [1, 0, 0], sizes = [1, 128, 128], strides = [1, 1, 1]} : vector<2x128x128xf32> to vector<1x128x128xf32>
    %52 = vector.shape_cast %51 : vector<1x128x128xf32> to vector<128x128xf32>
    %cst_22 = arith.constant dense<0.000000e+00> : vector<128x128xf32>
    %53 = tpu.matmul %50, %52, %cst_22 {dimension_numbers = #tpu.dot_dimension_numbers<[1], [1], [0], [0], [0, 0, 1, 0], [], []>} : vector<128x128xf32>, vector<128x128xf32>, vector<128x128xf32> -> vector<128x128xf32>
    %cst_23 = arith.constant 2.500000e-01 : f32
    %54 = vector.broadcast %cst_23 : f32 to vector<128x128xf32>
    %55 = arith.mulf %53, %54 : vector<128x128xf32>
    %56 = vector.broadcast %20 : vector<1x128xf32> to vector<128x128xf32>
    %57 = arith.addf %55, %56 : vector<128x128xf32>
    %cst_24 = arith.constant dense<0xFF800000> : vector<128xf32>
    %58 = vector.multi_reduction <maximumf>, %57, %cst_24 [1] : vector<128x128xf32> to vector<128xf32>
    %59 = vector.shape_cast %58 : vector<128xf32> to vector<128x1xf32>
    %60 = vector.broadcast %59 : vector<128x1xf32> to vector<128x128xf32>
    %61 = arith.subf %57, %60 : vector<128x128xf32>
    %62 = math.exp %61 : vector<128x128xf32>
    %cst_25 = arith.constant dense<0.000000e+00> : vector<128xf32>
    %63 = vector.multi_reduction <add>, %62, %cst_25 [1] : vector<128x128xf32> to vector<128xf32>
    %64 = vector.shape_cast %63 : vector<128xf32> to vector<128x1xf32>
    %65 = tpu.reciprocal %64 {approx = true} : vector<128x1xf32> -> vector<128x1xf32>
    %66 = vector.broadcast %65 : vector<128x1xf32> to vector<128x128xf32>
    %67 = arith.mulf %62, %66 : vector<128x128xf32>
    %c1 = arith.constant 1 : index
    %c0_26 = arith.constant 0 : index
    %c0_27 = arith.constant 0 : index
    %68 = vector.load %arg7[%c1, %c0_26, %c0_27] : memref<2x128x128xf32, #tpu.memory_space<vmem>>, vector<1x128x128xf32>
    %69 = vector.shape_cast %68 : vector<1x128x128xf32> to vector<128x128xf32>
    %70 = vector.shape_cast %67 : vector<128x128xf32> to vector<1x128x128xf32>
    tpu.vector_store %arg7[%c1, %c0_26, %c0_27], %70 {strides = array<i32>} : memref<2x128x128xf32, #tpu.memory_space<vmem>>, vector<1x128x128xf32>,
    %71 = vector.extract_strided_slice %14 {offsets = [1, 0, 0], sizes = [1, 128, 128], strides = [1, 1, 1]} : vector<2x128x128xf32> to vector<1x128x128xf32>
    %72 = vector.shape_cast %71 : vector<1x128x128xf32> to vector<128x128xf32>
    %cst_28 = arith.constant dense<0.000000e+00> : vector<128x128xf32>
    %73 = tpu.matmul %67, %72, %cst_28 {dimension_numbers = #tpu.dot_dimension_numbers<[1], [0], [0], [1], [0, 0, 1, 1], [], []>} : vector<128x128xf32>, vector<128x128xf32>, vector<128x128xf32> -> vector<128x128xf32>
    %c1_29 = arith.constant 1 : index
    %c0_30 = arith.constant 0 : index
    %c0_31 = arith.constant 0 : index
    %74 = vector.load %arg9[%c1_29, %c0_30, %c0_31] : memref<2x128x128xf32, #tpu.memory_space<vmem>>, vector<1x128x128xf32>
    %75 = vector.shape_cast %74 : vector<1x128x128xf32> to vector<128x128xf32>
    %76 = vector.shape_cast %73 : vector<128x128xf32> to vector<1x128x128xf32>
    tpu.vector_store %arg9[%c1_29, %c0_30, %c0_31], %76 {strides = array<i32>} : memref<2x128x128xf32, #tpu.memory_space<vmem>>, vector<1x128x128xf32>,
    %c0_32 = arith.constant 0 : index
    %c0_33 = arith.constant 0 : index
    %c0_34 = arith.constant 0 : index
    %77 = vector.load %arg9[%c0_32, %c0_33, %c0_34] : memref<2x128x128xf32, #tpu.memory_space<vmem>>, vector<2x128x128xf32>
    %78 = vector.shape_cast %77 : vector<2x128x128xf32> to vector<256x128xf32>
    %79 = arith.addf %6, %78 : vector<256x128xf32>
    %c0_35 = arith.constant 0 : index
    %c0_36 = arith.constant 0 : index
    %80 = vector.load %arg5[%c0_35, %c0_36] : memref<128x128xf32, #tpu.memory_space<vmem>>, vector<128x128xf32>
    %cst_37 = arith.constant dense<0.000000e+00> : vector<256x128xf32>
    %81 = tpu.matmul %79, %80, %cst_37 {dimension_numbers = #tpu.dot_dimension_numbers<[1], [0], [0], [1], [0, 0, 1, 1], [], []>} : vector<256x128xf32>, vector<128x128xf32>, vector<256x128xf32> -> vector<256x128xf32>
    %c0_38 = arith.constant 0 : index
    %c0_39 = arith.constant 0 : index
    %82 = vector.load %arg6[%c0_38, %c0_39] : memref<1x128xf32, #tpu.memory_space<vmem>>, vector<1x128xf32>
    %83 = vector.broadcast %82 : vector<1x128xf32> to vector<256x128xf32>
    %84 = arith.addf %81, %83 : vector<256x128xf32>
    %85 = vector.shape_cast %84 : vector<256x128xf32> to vector<2x128x128xf32>
    %c0_40 = arith.constant 0 : index
    %c0_41 = arith.constant 0 : index
    %c0_42 = arith.constant 0 : index
    %86 = vector.load %arg8[%c0_40, %c0_41, %c0_42] : memref<2x128x128xf32, #tpu.memory_space<vmem>>, vector<2x128x128xf32>
    tpu.vector_store %arg8[%c0_40, %c0_41, %c0_42], %85 {strides = array<i32>} : memref<2x128x128xf32, #tpu.memory_space<vmem>>, vector<2x128x128xf32>,
    return
  }
  func.func @transform_0(%arg0: i32) -> (i32, i32, i32) {
    %c0_i32 = arith.constant 0 : i32
    %c0_i32_0 = arith.constant 0 : i32
    %c0_i32_1 = arith.constant 0 : i32
    return %arg0, %c0_i32, %c0_i32_0 : i32, i32, i32
  }
  func.func @transform_1(%arg0: i32) -> (i32, i32) {
    %c0_i32 = arith.constant 0 : i32
    %c0_i32_0 = arith.constant 0 : i32
    %c0_i32_1 = arith.constant 0 : i32
    return %c0_i32, %c0_i32_0 : i32, i32
  }
  func.func @transform_2(%arg0: i32) -> (i32, i32) {
    %c0_i32 = arith.constant 0 : i32
    %c0_i32_0 = arith.constant 0 : i32
    %c0_i32_1 = arith.constant 0 : i32
    return %c0_i32, %c0_i32_0 : i32, i32
  }
  func.func @transform_3(%arg0: i32) -> (i32, i32) {
    %c0_i32 = arith.constant 0 : i32
    %c0_i32_0 = arith.constant 0 : i32
    %c0_i32_1 = arith.constant 0 : i32
    return %c0_i32, %c0_i32_0 : i32, i32
  }
  func.func @transform_4(%arg0: i32) -> (i32, i32) {
    %c0_i32 = arith.constant 0 : i32
    %c0_i32_0 = arith.constant 0 : i32
    %c0_i32_1 = arith.constant 0 : i32
    return %c0_i32, %c0_i32_0 : i32, i32
  }
  func.func @transform_5(%arg0: i32) -> (i32, i32) {
    %c0_i32 = arith.constant 0 : i32
    %c0_i32_0 = arith.constant 0 : i32
    %c0_i32_1 = arith.constant 0 : i32
    return %c0_i32, %c0_i32_0 : i32, i32
  }
  func.func @transform_6(%arg0: i32) -> (i32, i32, i32) {
    %c0_i32 = arith.constant 0 : i32
    %c0_i32_0 = arith.constant 0 : i32
    %c0_i32_1 = arith.constant 0 : i32
    return %arg0, %c0_i32, %c0_i32_0 : i32, i32, i32
  }
  func.func @transform_7(%arg0: i32) -> (i32, i32, i32) {
    %c0_i32 = arith.constant 0 : i32
    %c0_i32_0 = arith.constant 0 : i32
    %c0_i32_1 = arith.constant 0 : i32
    return %arg0, %c0_i32, %c0_i32_0 : i32, i32, i32
  }
}

</mosaic_0001>

<llo_original>
// kernel: tpu_custom_call.1
$region0: #{tpu_custom_call.1}
  #allocation0 [shape = 'u32[]', space=smem, size = 0x4, offset = 0x4, fixed_abs, tag = 'smem constant byte address 0x4 - core index']
  #allocation1 [shape = 'u32[144,128]{1,0:T(1,128)}', space=vmem, size = 0x12000, scoped, tag = 'internal scratch']
  #allocation2 [shape = 'f32[2,128,128]{2,1,0:T(8,128)}', space=vmem, size = 0x20000, scoped, tag = 'scratch operand']
  %s0 = inlined_call_operand.hbm [shape: f32[2,128,128], index: 0, kind: input, shape index: {}]
  %s1 = inlined_call_operand.hbm [shape: f32[128,128], index: 1, kind: input, shape index: {}]
  %s2 = inlined_call_operand.vmem [shape: f32[1,128], index: 2, kind: input, shape index: {}]
  %s3 = inlined_call_operand.hbm [shape: f32[128,384], index: 3, kind: input, shape index: {}]
  %s4 = inlined_call_operand.hbm [shape: f32[128,128], index: 4, kind: input, shape index: {}]
  %s5 = inlined_call_operand.vmem [shape: f32[1,128], index: 5, kind: input, shape index: {}]
  %s6 = inlined_call_operand.hbm [shape: f32[2,128,128], index: 6, kind: output, shape index: {0}]
  %s7 = inlined_call_operand.hbm [shape: f32[2,128,128], index: 7, kind: output, shape index: {1}]
  %8 = xla_tuple %s6, %s7
  %s9 = sld [smem:[#allocation0]]
  $region58: #{tpu_custom_call.1} parent=0
    _
  %s11 = ssub.s32 1, %s9
  %s12 = scalar_select 0, %s11, %s9
  $region1: #{tpu_custom_call.1} parent=0
    #allocation3 [shape = 'u8[131072]{0}', space=vmem, size = 0x20000, scoped, tag = 'input window, operand 0, single buffered']
    #allocation4 [shape = 's32[1]{0}', space=sflag, size = 0x4, scoped, tag = 'scoped memory for tpu_custom_call.1']
    #allocation5 [shape = 's32[1]{0}', space=sflag, size = 0x4, scoped, tag = 'scoped memory for tpu_custom_call.1']
    #allocation6 [shape = 'u8[65536]{0}', space=vmem, size = 0x10000, scoped, tag = 'input window, operand 1, single buffered']
    #allocation7 [shape = 's32[1]{0}', space=sflag, size = 0x4, scoped, tag = 'scoped memory for tpu_custom_call.1']
    #allocation8 [shape = 'u8[196608]{0}', space=vmem, size = 0x30000, scoped, tag = 'input window, operand 3, single buffered']
    #allocation9 [shape = 'u8[65536]{0}', space=vmem, size = 0x10000, scoped, tag = 'input window, operand 4, single buffered']
    #allocation10 [shape = 's32[1]{0}', space=sflag, size = 0x4, scoped, tag = 'scoped memory for tpu_custom_call.1']
    #allocation11 [shape = 'u8[131072]{0}', space=vmem, size = 0x20000, scoped, tag = 'output window, operand 0, single buffered']
    #allocation12 [shape = 'u8[131072]{0}', space=vmem, size = 0x20000, scoped, tag = 'output window, operand 1, single buffered']
    #allocation13 [shape = 's32[1]{0}', space=sflag, size = 0x4, scoped, tag = 'scoped memory for tpu_custom_call.1']
    %13 = vsyncpa [#allocation4], 0
    %14 = vsyncpa [#allocation7], 0
    %15 = vsyncpa [#allocation10], 0
    %16 = vsyncpa [#allocation5], 0
    %17 = vsyncpa [#allocation13], 0
    // Predicated region
    $region2: #{tpu_custom_call.1} parent=1 // pred_check
      _
    $region3: #{tpu_custom_call.1} parent=1 // pred_check_branch
      %19 = sbr.rel (0) target = $region5
    $region4: #{tpu_custom_call.1} parent=1 // pred_region
      %s21 = ssub.s32 4096, 4096
      %22 = vsyncadd [#allocation4], %s21
      %s23 = sshll.u32 [#allocation3], 4
      %s24 = int_to_ptr.vmem [resolvable:$true] %s23
      %29 = dma.hbm_to_vmem [thread:$0]  %s0, 4096, %s24, [#allocation4], 128, 128, 8
    $region5: #{tpu_custom_call.1} parent=1 // pred_fallthru
      _
    // Predicated region
    $region6: #{tpu_custom_call.1} parent=1 // pred_check
      _
    $region7: #{tpu_custom_call.1} parent=1 // pred_check_branch
      %31 = sbr.rel (0) target = $region9
    $region8: #{tpu_custom_call.1} parent=1 // pred_region
      %s33 = ssub.s32 2048, 2048
      %34 = vsyncadd [#allocation7], %s33
      %s35 = sshll.u32 [#allocation6], 4
      %s36 = int_to_ptr.vmem [resolvable:$true] %s35
      %41 = dma.hbm_to_vmem [thread:$0]  %s1, 2048, %s36, [#allocation7], 128, 128, 8
    $region9: #{tpu_custom_call.1} parent=1 // pred_fallthru
      _
    // Predicated region
    $region10: #{tpu_custom_call.1} parent=1 // pred_check
      _
    $region11: #{tpu_custom_call.1} parent=1 // pred_check_branch
      %43 = sbr.rel (0) target = $region13
    $region12: #{tpu_custom_call.1} parent=1 // pred_region
      _
    $region13: #{tpu_custom_call.1} parent=1 // pred_fallthru
      _
    // Predicated region
    $region14: #{tpu_custom_call.1} parent=1 // pred_check
      _
    $region15: #{tpu_custom_call.1} parent=1 // pred_check_branch
      %45 = sbr.rel (0) target = $region17
    $region16: #{tpu_custom_call.1} parent=1 // pred_region
      %s47 = ssub.s32 6144, 6144
      %48 = vsyncadd [#allocation7], %s47
      %s49 = sshll.u32 [#allocation8], 4
      %s50 = int_to_ptr.vmem [resolvable:$true] %s49
      %55 = dma.hbm_to_vmem [thread:$0]  %s3, 6144, %s50, [#allocation7], 384, 384, 24
    $region17: #{tpu_custom_call.1} parent=1 // pred_fallthru
      _
    // Predicated region
    $region18: #{tpu_custom_call.1} parent=1 // pred_check
      _
    $region19: #{tpu_custom_call.1} parent=1 // pred_check_branch
      %57 = sbr.rel (0) target = $region21
    $region20: #{tpu_custom_call.1} parent=1 // pred_region
      %s59 = ssub.s32 2048, 2048
      %60 = vsyncadd [#allocation10], %s59
      %s61 = sshll.u32 [#allocation9], 4
      %s62 = int_to_ptr.vmem [resolvable:$true] %s61
      %67 = dma.hbm_to_vmem [thread:$0]  %s4, 2048, %s62, [#allocation10], 128, 128, 8
    $region21: #{tpu_custom_call.1} parent=1 // pred_fallthru
      _
    // Predicated region
    $region22: #{tpu_custom_call.1} parent=1 // pred_check
      _
    $region23: #{tpu_custom_call.1} parent=1 // pred_check_branch
      %69 = sbr.rel (0) target = $region25
    $region24: #{tpu_custom_call.1} parent=1 // pred_region
      _
    $region25: #{tpu_custom_call.1} parent=1 // pred_fallthru
      _
    // Predicated region
    $region26: #{tpu_custom_call.1} parent=1 // pred_check
      _
    $region27: #{tpu_custom_call.1} parent=1 // pred_check_branch
      %71 = sbr.rel (0) target = $region29
    $region28: #{tpu_custom_call.1} parent=1 // pred_region
      %72 = dma.done [#allocation4], 4096
    $region29: #{tpu_custom_call.1} parent=1 // pred_fallthru
      _
    // Predicated region
    $region30: #{tpu_custom_call.1} parent=1 // pred_check
      _
    $region31: #{tpu_custom_call.1} parent=1 // pred_check_branch
      %74 = sbr.rel (0) target = $region33
    $region32: #{tpu_custom_call.1} parent=1 // pred_region
      %75 = dma.done [#allocation7], 2048
    $region33: #{tpu_custom_call.1} parent=1 // pred_fallthru
      _
    // Predicated region
    $region34: #{tpu_custom_call.1} parent=1 // pred_check
      _
    $region35: #{tpu_custom_call.1} parent=1 // pred_check_branch
      %77 = sbr.rel (0) target = $region37
    $region36: #{tpu_custom_call.1} parent=1 // pred_region
      %78 = dma.done [#allocation7], 6144
    $region37: #{tpu_custom_call.1} parent=1 // pred_fallthru
      _
    // Predicated region
    $region38: #{tpu_custom_call.1} parent=1 // pred_check
      _
    $region39: #{tpu_custom_call.1} parent=1 // pred_check_branch
      %80 = sbr.rel (0) target = $region41
    $region40: #{tpu_custom_call.1} parent=1 // pred_region
      %81 = dma.done [#allocation10], 2048
    $region41: #{tpu_custom_call.1} parent=1 // pred_fallthru
      _
    %v82 = vld [vmem:[#allocation3] sm:$0xff]
    %v83 = vld [vmem:[#allocation3 + $0x8] sm:$0xff]
    %v84 = vld [vmem:[#allocation3 + $0x10] sm:$0xff]
    %v85 = vld [vmem:[#allocation3 + $0x18] sm:$0xff]
    %v86 = vld [vmem:[#allocation3 + $0x20] sm:$0xff]
    %v87 = vld [vmem:[#allocation3 + $0x28] sm:$0xff]
    %v88 = vld [vmem:[#allocation3 + $0x30] sm:$0xff]
    %v89 = vld [vmem:[#allocation3 + $0x38] sm:$0xff]
    %v90 = vld [vmem:[#allocation3 + $0x40] sm:$0xff]
    %v91 = vld [vmem:[#allocation3 + $0x48] sm:$0xff]
    %v92 = vld [vmem:[#allocation3 + $0x50] sm:$0xff]
    %v93 = vld [vmem:[#allocation3 + $0x58] sm:$0xff]
    %v94 = vld [vmem:[#allocation3 + $0x60] sm:$0xff]
    %v95 = vld [vmem:[#allocation3 + $0x68] sm:$0xff]
    %v96 = vld [vmem:[#allocation3 + $0x70] sm:$0xff]
    %v97 = vld [vmem:[#allocation3 + $0x78] sm:$0xff]
    %v98 = vld [vmem:[#allocation3 + $0x80] sm:$0xff]
    %v99 = vld [vmem:[#allocation3 + $0x88] sm:$0xff]
    %v100 = vld [vmem:[#allocation3 + $0x90] sm:$0xff]
    %v101 = vld [vmem:[#allocation3 + $0x98] sm:$0xff]
    %v102 = vld [vmem:[#allocation3 + $0xa0] sm:$0xff]
    %v103 = vld [vmem:[#allocation3 + $0xa8] sm:$0xff]
    %v104 = vld [vmem:[#allocation3 + $0xb0] sm:$0xff]
    %v105 = vld [vmem:[#allocation3 + $0xb8] sm:$0xff]
    %v106 = vld [vmem:[#allocation3 + $0xc0] sm:$0xff]
    %v107 = vld [vmem:[#allocation3 + $0xc8] sm:$0xff]
    %v108 = vld [vmem:[#allocation3 + $0xd0] sm:$0xff]
    %v109 = vld [vmem:[#allocation3 + $0xd8] sm:$0xff]
    %v110 = vld [vmem:[#allocation3 + $0xe0] sm:$0xff]
    %v111 = vld [vmem:[#allocation3 + $0xe8] sm:$0xff]
    %v112 = vld [vmem:[#allocation3 + $0xf0] sm:$0xff]
    %v113 = vld [vmem:[#allocation3 + $0xf8] sm:$0xff]
    %v114 = vld [vmem:[#allocation6] sm:$0xff]
    %v115 = vld [vmem:[#allocation6 + $0x8] sm:$0xff]
    %v116 = vld [vmem:[#allocation6 + $0x10] sm:$0xff]
    %v117 = vld [vmem:[#allocation6 + $0x18] sm:$0xff]
    %v118 = vld [vmem:[#allocation6 + $0x20] sm:$0xff]
    %v119 = vld [vmem:[#allocation6 + $0x28] sm:$0xff]
    %v120 = vld [vmem:[#allocation6 + $0x30] sm:$0xff]
    %v121 = vld [vmem:[#allocation6 + $0x38] sm:$0xff]
    %v122 = vld [vmem:[#allocation6 + $0x40] sm:$0xff]
    %v123 = vld [vmem:[#allocation6 + $0x48] sm:$0xff]
    %v124 = vld [vmem:[#allocation6 + $0x50] sm:$0xff]
    %v125 = vld [vmem:[#allocation6 + $0x58] sm:$0xff]
    %v126 = vld [vmem:[#allocation6 + $0x60] sm:$0xff]
    %v127 = vld [vmem:[#allocation6 + $0x68] sm:$0xff]
    %v128 = vld [vmem:[#allocation6 + $0x70] sm:$0xff]
    %v129 = vld [vmem:[#allocation6 + $0x78] sm:$0xff]
    %v130 = vld [vmem:[%s2] sm:$0x1]
    %v132 = vlaneseq
    %v133 = vshrl.u32 %v132, 7
    %v134 = vsub.s32 0, %v133
    %v135 = vrot.slane %v130, %v134
    %137 = vmatprep.subr.mxu0 0.0
    %138 = vmatpush1.msra.mxu0 %v129
    %139 = vmatprep.subr.mxu0 0.0
    %140 = vmatpush1.msra.mxu0 %v128
    %141 = vmatprep.subr.mxu0 0.0
    %142 = vmatpush1.msra.mxu0 %v127
    %143 = vmatprep.subr.mxu0 0.0
    %144 = vmatpush1.msra.mxu0 %v126
    %145 = vmatprep.subr.mxu0 0.0
    %146 = vmatpush1.msra.mxu0 %v125
    %147 = vmatprep.subr.mxu0 0.0
    %148 = vmatpush1.msra.mxu0 %v124
    %149 = vmatprep.subr.mxu0 0.0
    %150 = vmatpush1.msra.mxu0 %v123
    %151 = vmatprep.subr.mxu0 0.0
    %152 = vmatpush1.msra.mxu0 %v122
    %153 = vmatprep.subr.mxu0 0.0
    %154 = vmatpush1.msra.mxu0 %v121
    %155 = vmatprep.subr.mxu0 0.0
    %156 = vmatpush1.msra.mxu0 %v120
    %157 = vmatprep.subr.mxu0 0.0
    %158 = vmatpush1.msra.mxu0 %v119
    %159 = vmatprep.subr.mxu0 0.0
    %160 = vmatpush1.msra.mxu0 %v118
    %161 = vmatprep.subr.mxu0 0.0
    %162 = vmatpush1.msra.mxu0 %v117
    %163 = vmatprep.subr.mxu0 0.0
    %164 = vmatpush1.msra.mxu0 %v116
    %165 = vmatprep.subr.mxu0 0.0
    %166 = vmatpush1.msra.mxu0 %v115
    %167 = vmatprep.subr.mxu0 0.0
    %168 = vmatpush1.msra.mxu0 %v114
    %169 = vmatprep.subr.mxu0 0.0
    %170 = vmatpush2.msra.mxu0 0.0
    %171 = vmatprep.subr.mxu0 0.0
    %172 = vmatpush2.msra.mxu0 0.0
    %173 = vmatprep.subr.mxu0 0.0
    %174 = vmatpush2.msra.mxu0 0.0
    %175 = vmatprep.subr.mxu0 0.0
    %176 = vmatpush2.msra.mxu0 0.0
    %177 = vmatprep.subr.mxu0 0.0
    %178 = vmatpush2.msra.mxu0 0.0
    %179 = vmatprep.subr.mxu0 0.0
    %180 = vmatpush2.msra.mxu0 0.0
    %181 = vmatprep.subr.mxu0 0.0
    %182 = vmatpush2.msra.mxu0 0.0
    %183 = vmatprep.subr.mxu0 0.0
    %184 = vmatpush2.msra.mxu0 0.0
    %185 = vmatprep.subr.mxu0 0.0
    %186 = vmatpush2.msra.mxu0 0.0
    %187 = vmatprep.subr.mxu0 0.0
    %188 = vmatpush2.msra.mxu0 0.0
    %189 = vmatprep.subr.mxu0 0.0
    %190 = vmatpush2.msra.mxu0 0.0
    %191 = vmatprep.subr.mxu0 0.0
    %192 = vmatpush2.msra.mxu0 0.0
    %193 = vmatprep.subr.mxu0 0.0
    %194 = vmatpush2.msra.mxu0 0.0
    %195 = vmatprep.subr.mxu0 0.0
    %196 = vmatpush2.msra.mxu0 0.0
    %197 = vmatprep.subr.mxu0 0.0
    %198 = vmatpush2.msra.mxu0 0.0
    %199 = vmatprep.subr.mxu0 0.0
    %200 = vmatpush2.msra.mxu0 0.0
    %201 = vmatprep.mubr.f32.mxu0 0.0
    %202 = vmatmul.mubr.f32.gmra.mxu0 %v82
    %v203 = vpop.f32.mrf.mxu0
    %v204 = vadd.f32 %v135, %v203
    %v205 = vpop.f32.mrf.mxu0
    %206 = vmatprep.mubr.f32.mxu0 0.0
    %207 = vmatmul.mubr.f32.gmra.mxu0 %v83
    %v208 = vpop.f32.mrf.mxu0
    %v209 = vadd.f32 %v135, %v208
    %v210 = vpop.f32.mrf.mxu0
    %211 = vmatprep.mubr.f32.mxu0 0.0
    %212 = vmatmul.mubr.f32.gmra.mxu0 %v84
    %v213 = vpop.f32.mrf.mxu0
    %v214 = vadd.f32 %v135, %v213
    %v215 = vpop.f32.mrf.mxu0
    %216 = vmatprep.mubr.f32.mxu0 0.0
    %217 = vmatmul.mubr.f32.gmra.mxu0 %v85
    %v218 = vpop.f32.mrf.mxu0
    %v219 = vadd.f32 %v135, %v218
    %v220 = vpop.f32.mrf.mxu0
    %221 = vmatprep.mubr.f32.mxu0 0.0
    %222 = vmatmul.mubr.f32.gmra.mxu0 %v86
    %v223 = vpop.f32.mrf.mxu0
    %v224 = vadd.f32 %v135, %v223
    %v225 = vpop.f32.mrf.mxu0
    %226 = vmatprep.mubr.f32.mxu0 0.0
    %227 = vmatmul.mubr.f32.gmra.mxu0 %v87
    %v228 = vpop.f32.mrf.mxu0
    %v229 = vadd.f32 %v135, %v228
    %v230 = vpop.f32.mrf.mxu0
    %231 = vmatprep.mubr.f32.mxu0 0.0
    %232 = vmatmul.mubr.f32.gmra.mxu0 %v88
    %v233 = vpop.f32.mrf.mxu0
    %v234 = vadd.f32 %v135, %v233
    %v235 = vpop.f32.mrf.mxu0
    %236 = vmatprep.mubr.f32.mxu0 0.0
    %237 = vmatmul.mubr.f32.gmra.mxu0 %v89
    %v238 = vpop.f32.mrf.mxu0
    %v239 = vadd.f32 %v135, %v238
    %v240 = vpop.f32.mrf.mxu0
    %241 = vmatprep.mubr.f32.mxu0 0.0
    %242 = vmatmul.mubr.f32.gmra.mxu0 %v90
    %v243 = vpop.f32.mrf.mxu0
    %v244 = vadd.f32 %v135, %v243
    %v245 = vpop.f32.mrf.mxu0
    %246 = vmatprep.mubr.f32.mxu0 0.0
    %247 = vmatmul.mubr.f32.gmra.mxu0 %v91
    %v248 = vpop.f32.mrf.mxu0
    %v249 = vadd.f32 %v135, %v248
    %v250 = vpop.f32.mrf.mxu0
    %251 = vmatprep.mubr.f32.mxu0 0.0
    %252 = vmatmul.mubr.f32.gmra.mxu0 %v92
    %v253 = vpop.f32.mrf.mxu0
    %v254 = vadd.f32 %v135, %v253
    %v255 = vpop.f32.mrf.mxu0
    %256 = vmatprep.mubr.f32.mxu0 0.0
    %257 = vmatmul.mubr.f32.gmra.mxu0 %v93
    %v258 = vpop.f32.mrf.mxu0
    %v259 = vadd.f32 %v135, %v258
    %v260 = vpop.f32.mrf.mxu0
    %261 = vmatprep.mubr.f32.mxu0 0.0
    %262 = vmatmul.mubr.f32.gmra.mxu0 %v94
    %v263 = vpop.f32.mrf.mxu0
    %v264 = vadd.f32 %v135, %v263
    %v265 = vpop.f32.mrf.mxu0
    %266 = vmatprep.mubr.f32.mxu0 0.0
    %267 = vmatmul.mubr.f32.gmra.mxu0 %v95
    %v268 = vpop.f32.mrf.mxu0
    %v269 = vadd.f32 %v135, %v268
    %v270 = vpop.f32.mrf.mxu0
    %271 = vmatprep.mubr.f32.mxu0 0.0
    %272 = vmatmul.mubr.f32.gmra.mxu0 %v96
    %v273 = vpop.f32.mrf.mxu0
    %v274 = vadd.f32 %v135, %v273
    %v275 = vpop.f32.mrf.mxu0
    %276 = vmatprep.mubr.f32.mxu0 0.0
    %277 = vmatmul.mubr.f32.gmra.mxu0 %v97
    %v278 = vpop.f32.mrf.mxu0
    %v279 = vadd.f32 %v135, %v278
    %v280 = vpop.f32.mrf.mxu0
    %281 = vmatprep.mubr.f32.mxu0 0.0
    %282 = vmatmul.mubr.f32.gmra.mxu0 %v98
    %v283 = vpop.f32.mrf.mxu0
    %v284 = vadd.f32 %v135, %v283
    %v285 = vpop.f32.mrf.mxu0
    %286 = vmatprep.mubr.f32.mxu0 0.0
    %287 = vmatmul.mubr.f32.gmra.mxu0 %v99
    %v288 = vpop.f32.mrf.mxu0
    %v289 = vadd.f32 %v135, %v288
    %v290 = vpop.f32.mrf.mxu0
    %291 = vmatprep.mubr.f32.mxu0 0.0
    %292 = vmatmul.mubr.f32.gmra.mxu0 %v100
    %v293 = vpop.f32.mrf.mxu0
    %v294 = vadd.f32 %v135, %v293
    %v295 = vpop.f32.mrf.mxu0
    %296 = vmatprep.mubr.f32.mxu0 0.0
    %297 = vmatmul.mubr.f32.gmra.mxu0 %v101
    %v298 = vpop.f32.mrf.mxu0
    %v299 = vadd.f32 %v135, %v298
    %v300 = vpop.f32.mrf.mxu0
    %301 = vmatprep.mubr.f32.mxu0 0.0
    %302 = vmatmul.mubr.f32.gmra.mxu0 %v102
    %v303 = vpop.f32.mrf.mxu0
    %v304 = vadd.f32 %v135, %v303
    %v305 = vpop.f32.mrf.mxu0
    %306 = vmatprep.mubr.f32.mxu0 0.0
    %307 = vmatmul.mubr.f32.gmra.mxu0 %v103
    %v308 = vpop.f32.mrf.mxu0
    %v309 = vadd.f32 %v135, %v308
    %v310 = vpop.f32.mrf.mxu0
    %311 = vmatprep.mubr.f32.mxu0 0.0
    %312 = vmatmul.mubr.f32.gmra.mxu0 %v104
    %v313 = vpop.f32.mrf.mxu0
    %v314 = vadd.f32 %v135, %v313
    %v315 = vpop.f32.mrf.mxu0
    %316 = vmatprep.mubr.f32.mxu0 0.0
    %317 = vmatmul.mubr.f32.gmra.mxu0 %v105
    %v318 = vpop.f32.mrf.mxu0
    %v319 = vadd.f32 %v135, %v318
    %v320 = vpop.f32.mrf.mxu0
    %321 = vmatprep.mubr.f32.mxu0 0.0
    %322 = vmatmul.mubr.f32.gmra.mxu0 %v106
    %v323 = vpop.f32.mrf.mxu0
    %v324 = vadd.f32 %v135, %v323
    %v325 = vpop.f32.mrf.mxu0
    %326 = vmatprep.mubr.f32.mxu0 0.0
    %327 = vmatmul.mubr.f32.gmra.mxu0 %v107
    %v328 = vpop.f32.mrf.mxu0
    %v329 = vadd.f32 %v135, %v328
    %v330 = vpop.f32.mrf.mxu0
    %331 = vmatprep.mubr.f32.mxu0 0.0
    %332 = vmatmul.mubr.f32.gmra.mxu0 %v108
    %v333 = vpop.f32.mrf.mxu0
    %v334 = vadd.f32 %v135, %v333
    %v335 = vpop.f32.mrf.mxu0
    %336 = vmatprep.mubr.f32.mxu0 0.0
    %337 = vmatmul.mubr.f32.gmra.mxu0 %v109
    %v338 = vpop.f32.mrf.mxu0
    %v339 = vadd.f32 %v135, %v338
    %v340 = vpop.f32.mrf.mxu0
    %341 = vmatprep.mubr.f32.mxu0 0.0
    %342 = vmatmul.mubr.f32.gmra.mxu0 %v110
    %v343 = vpop.f32.mrf.mxu0
    %v344 = vadd.f32 %v135, %v343
    %v345 = vpop.f32.mrf.mxu0
    %346 = vmatprep.mubr.f32.mxu0 0.0
    %347 = vmatmul.mubr.f32.gmra.mxu0 %v111
    %v348 = vpop.f32.mrf.mxu0
    %v349 = vadd.f32 %v135, %v348
    %v350 = vpop.f32.mrf.mxu0
    %351 = vmatprep.mubr.f32.mxu0 0.0
    %352 = vmatmul.mubr.f32.gmra.mxu0 %v112
    %v353 = vpop.f32.mrf.mxu0
    %v354 = vadd.f32 %v135, %v353
    %v355 = vpop.f32.mrf.mxu0
    %356 = vmatprep.mubr.f32.mxu0 0.0
    %357 = vmatmul.mubr.f32.gmra.mxu0 %v113
    %v358 = vpop.f32.mrf.mxu0
    %v359 = vadd.f32 %v135, %v358
    %v360 = vpop.f32.mrf.mxu0
    %361 = vdwg.mxu0
    %v362 = vld [vmem:[#allocation8] sm:$0xff]
    %v363 = vld [vmem:[#allocation8 + $0x8] sm:$0xff]
    %v364 = vld [vmem:[#allocation8 + $0x10] sm:$0xff]
    %v365 = vld [vmem:[#allocation8 + $0x18] sm:$0xff]
    %v366 = vld [vmem:[#allocation8 + $0x20] sm:$0xff]
    %v367 = vld [vmem:[#allocation8 + $0x28] sm:$0xff]
    %v368 = vld [vmem:[#allocation8 + $0x30] sm:$0xff]
    %v369 = vld [vmem:[#allocation8 + $0x38] sm:$0xff]
    %v370 = vld [vmem:[#allocation8 + $0x40] sm:$0xff]
    %v371 = vld [vmem:[#allocation8 + $0x48] sm:$0xff]
    %v372 = vld [vmem:[#allocation8 + $0x50] sm:$0xff]
    %v373 = vld [vmem:[#allocation8 + $0x58] sm:$0xff]
    %v374 = vld [vmem:[#allocation8 + $0x60] sm:$0xff]
    %v375 = vld [vmem:[#allocation8 + $0x68] sm:$0xff]
    %v376 = vld [vmem:[#allocation8 + $0x70] sm:$0xff]
    %v377 = vld [vmem:[#allocation8 + $0x78] sm:$0xff]
    %v378 = vld [vmem:[#allocation8 + $0x80] sm:$0xff]
    %v379 = vld [vmem:[#allocation8 + $0x88] sm:$0xff]
    %v380 = vld [vmem:[#allocation8 + $0x90] sm:$0xff]
    %v381 = vld [vmem:[#allocation8 + $0x98] sm:$0xff]
    %v382 = vld [vmem:[#allocation8 + $0xa0] sm:$0xff]
    %v383 = vld [vmem:[#allocation8 + $0xa8] sm:$0xff]
    %v384 = vld [vmem:[#allocation8 + $0xb0] sm:$0xff]
    %v385 = vld [vmem:[#allocation8 + $0xb8] sm:$0xff]
    %v386 = vld [vmem:[#allocation8 + $0xc0] sm:$0xff]
    %v387 = vld [vmem:[#allocation8 + $0xc8] sm:$0xff]
    %v388 = vld [vmem:[#allocation8 + $0xd0] sm:$0xff]
    %v389 = vld [vmem:[#allocation8 + $0xd8] sm:$0xff]
    %v390 = vld [vmem:[#allocation8 + $0xe0] sm:$0xff]
    %v391 = vld [vmem:[#allocation8 + $0xe8] sm:$0xff]
    %v392 = vld [vmem:[#allocation8 + $0xf0] sm:$0xff]
    %v393 = vld [vmem:[#allocation8 + $0xf8] sm:$0xff]
    %v394 = vld [vmem:[#allocation8 + $0x100] sm:$0xff]
    %v395 = vld [vmem:[#allocation8 + $0x108] sm:$0xff]
    %v396 = vld [vmem:[#allocation8 + $0x110] sm:$0xff]
    %v397 = vld [vmem:[#allocation8 + $0x118] sm:$0xff]
    %v398 = vld [vmem:[#allocation8 + $0x120] sm:$0xff]
    %v399 = vld [vmem:[#allocation8 + $0x128] sm:$0xff]
    %v400 = vld [vmem:[#allocation8 + $0x130] sm:$0xff]
    %v401 = vld [vmem:[#allocation8 + $0x138] sm:$0xff]
    %v402 = vld [vmem:[#allocation8 + $0x140] sm:$0xff]
    %v403 = vld [vmem:[#allocation8 + $0x148] sm:$0xff]
    %v404 = vld [vmem:[#allocation8 + $0x150] sm:$0xff]
    %v405 = vld [vmem:[#allocation8 + $0x158] sm:$0xff]
    %v406 = vld [vmem:[#allocation8 + $0x160] sm:$0xff]
    %v407 = vld [vmem:[#allocation8 + $0x168] sm:$0xff]
    %v408 = vld [vmem:[#allocation8 + $0x170] sm:$0xff]
    %v409 = vld [vmem:[#allocation8 + $0x178] sm:$0xff]
    %410 = vmatprep.subr.mxu0 %v408
    %411 = vmatpush1.msra.mxu0 %v407
    %412 = vmatprep.subr.mxu0 %v405
    %413 = vmatpush1.msra.mxu0 %v404
    %414 = vmatprep.subr.mxu0 %v402
    %415 = vmatpush1.msra.mxu0 %v401
    %416 = vmatprep.subr.mxu0 %v399
    %417 = vmatpush1.msra.mxu0 %v398
    %418 = vmatprep.subr.mxu0 %v396
    %419 = vmatpush1.msra.mxu0 %v395
    %420 = vmatprep.subr.mxu0 %v393
    %421 = vmatpush1.msra.mxu0 %v392
    %422 = vmatprep.subr.mxu0 %v390
    %423 = vmatpush1.msra.mxu0 %v389
    %424 = vmatprep.subr.mxu0 %v387
    %425 = vmatpush1.msra.mxu0 %v386
    %426 = vmatprep.subr.mxu0 %v384
    %427 = vmatpush1.msra.mxu0 %v383
    %428 = vmatprep.subr.mxu0 %v381
    %429 = vmatpush1.msra.mxu0 %v380
    %430 = vmatprep.subr.mxu0 %v378
    %431 = vmatpush1.msra.mxu0 %v377
    %432 = vmatprep.subr.mxu0 %v375
    %433 = vmatpush1.msra.mxu0 %v374
    %434 = vmatprep.subr.mxu0 %v372
    %435 = vmatpush1.msra.mxu0 %v371
    %436 = vmatprep.subr.mxu0 %v369
    %437 = vmatpush1.msra.mxu0 %v368
    %438 = vmatprep.subr.mxu0 %v366
    %439 = vmatpush1.msra.mxu0 %v365
    %440 = vmatprep.subr.mxu0 %v363
    %441 = vmatpush1.msra.mxu0 %v362
    %442 = vmatprep.subr.mxu0 0.0
    %443 = vmatpush2.msra.mxu0 0.0
    %444 = vmatprep.subr.mxu0 0.0
    %445 = vmatpush2.msra.mxu0 0.0
    %446 = vmatprep.subr.mxu0 0.0
    %447 = vmatpush2.msra.mxu0 0.0
    %448 = vmatprep.subr.mxu0 0.0
    %449 = vmatpush2.msra.mxu0 0.0
    %450 = vmatprep.subr.mxu0 0.0
    %451 = vmatpush2.msra.mxu0 0.0
    %452 = vmatprep.subr.mxu0 0.0
    %453 = vmatpush2.msra.mxu0 0.0
    %454 = vmatprep.subr.mxu0 0.0
    %455 = vmatpush2.msra.mxu0 0.0
    %456 = vmatprep.subr.mxu0 0.0
    %457 = vmatpush2.msra.mxu0 0.0
    %458 = vmatprep.subr.mxu0 0.0
    %459 = vmatpush2.msra.mxu0 0.0
    %460 = vmatprep.subr.mxu0 0.0
    %461 = vmatpush2.msra.mxu0 0.0
    %462 = vmatprep.subr.mxu0 0.0
    %463 = vmatpush2.msra.mxu0 0.0
    %464 = vmatprep.subr.mxu0 0.0
    %465 = vmatpush2.msra.mxu0 0.0
    %466 = vmatprep.subr.mxu0 0.0
    %467 = vmatpush2.msra.mxu0 0.0
    %468 = vmatprep.subr.mxu0 0.0
    %469 = vmatpush2.msra.mxu0 0.0
    %470 = vmatprep.subr.mxu0 0.0
    %471 = vmatpush2.msra.mxu0 0.0
    %472 = vmatprep.subr.mxu0 0.0
    %473 = vmatpush2.msra.mxu0 0.0
    %474 = vmatprep.mubr.f32.mxu0 0.0
    %475 = vmatmul.mubr.f32.gmra.mxu0 %v204
    %v476 = vpop.f32.mrf.mxu0
    %v477 = vadd.f32 0.0, %v476
    %v478 = vpop.f32.mrf.mxu0
    %v479 = vadd.f32 0.0, %v478
    %480 = vmatprep.mubr.f32.mxu0 0.0
    %481 = vmatmul.mubr.f32.gmra.mxu0 %v209
    %v482 = vpop.f32.mrf.mxu0
    %v483 = vadd.f32 0.0, %v482
    %v484 = vpop.f32.mrf.mxu0
    %v485 = vadd.f32 0.0, %v484
    %486 = vmatprep.mubr.f32.mxu0 0.0
    %487 = vmatmul.mubr.f32.gmra.mxu0 %v214
    %v488 = vpop.f32.mrf.mxu0
    %v489 = vadd.f32 0.0, %v488
    %v490 = vpop.f32.mrf.mxu0
    %v491 = vadd.f32 0.0, %v490
    %492 = vmatprep.mubr.f32.mxu0 0.0
    %493 = vmatmul.mubr.f32.gmra.mxu0 %v219
    %v494 = vpop.f32.mrf.mxu0
    %v495 = vadd.f32 0.0, %v494
    %v496 = vpop.f32.mrf.mxu0
    %v497 = vadd.f32 0.0, %v496
    %498 = vmatprep.mubr.f32.mxu0 0.0
    %499 = vmatmul.mubr.f32.gmra.mxu0 %v224
    %v500 = vpop.f32.mrf.mxu0
    %v501 = vadd.f32 0.0, %v500
    %v502 = vpop.f32.mrf.mxu0
    %v503 = vadd.f32 0.0, %v502
    %504 = vmatprep.mubr.f32.mxu0 0.0
    %505 = vmatmul.mubr.f32.gmra.mxu0 %v229
    %v506 = vpop.f32.mrf.mxu0
    %v507 = vadd.f32 0.0, %v506
    %v508 = vpop.f32.mrf.mxu0
    %v509 = vadd.f32 0.0, %v508
    %510 = vmatprep.mubr.f32.mxu0 0.0
    %511 = vmatmul.mubr.f32.gmra.mxu0 %v234
    %v512 = vpop.f32.mrf.mxu0
    %v513 = vadd.f32 0.0, %v512
    %v514 = vpop.f32.mrf.mxu0
    %v515 = vadd.f32 0.0, %v514
    %516 = vmatprep.mubr.f32.mxu0 0.0
    %517 = vmatmul.mubr.f32.gmra.mxu0 %v239
    %v518 = vpop.f32.mrf.mxu0
    %v519 = vadd.f32 0.0, %v518
    %v520 = vpop.f32.mrf.mxu0
    %v521 = vadd.f32 0.0, %v520
    %522 = vmatprep.mubr.f32.mxu0 0.0
    %523 = vmatmul.mubr.f32.gmra.mxu0 %v244
    %v524 = vpop.f32.mrf.mxu0
    %v525 = vadd.f32 0.0, %v524
    %v526 = vpop.f32.mrf.mxu0
    %v527 = vadd.f32 0.0, %v526
    %528 = vmatprep.mubr.f32.mxu0 0.0
    %529 = vmatmul.mubr.f32.gmra.mxu0 %v249
    %v530 = vpop.f32.mrf.mxu0
    %v531 = vadd.f32 0.0, %v530
    %v532 = vpop.f32.mrf.mxu0
    %v533 = vadd.f32 0.0, %v532
    %534 = vmatprep.mubr.f32.mxu0 0.0
    %535 = vmatmul.mubr.f32.gmra.mxu0 %v254
    %v536 = vpop.f32.mrf.mxu0
    %v537 = vadd.f32 0.0, %v536
    %v538 = vpop.f32.mrf.mxu0
    %v539 = vadd.f32 0.0, %v538
    %540 = vmatprep.mubr.f32.mxu0 0.0
    %541 = vmatmul.mubr.f32.gmra.mxu0 %v259
    %v542 = vpop.f32.mrf.mxu0
    %v543 = vadd.f32 0.0, %v542
    %v544 = vpop.f32.mrf.mxu0
    %v545 = vadd.f32 0.0, %v544
    %546 = vmatprep.mubr.f32.mxu0 0.0
    %547 = vmatmul.mubr.f32.gmra.mxu0 %v264
    %v548 = vpop.f32.mrf.mxu0
    %v549 = vadd.f32 0.0, %v548
    %v550 = vpop.f32.mrf.mxu0
    %v551 = vadd.f32 0.0, %v550
    %552 = vmatprep.mubr.f32.mxu0 0.0
    %553 = vmatmul.mubr.f32.gmra.mxu0 %v269
    %v554 = vpop.f32.mrf.mxu0
    %v555 = vadd.f32 0.0, %v554
    %v556 = vpop.f32.mrf.mxu0
    %v557 = vadd.f32 0.0, %v556
    %558 = vmatprep.mubr.f32.mxu0 0.0
    %559 = vmatmul.mubr.f32.gmra.mxu0 %v274
    %v560 = vpop.f32.mrf.mxu0
    %v561 = vadd.f32 0.0, %v560
    %v562 = vpop.f32.mrf.mxu0
    %v563 = vadd.f32 0.0, %v562
    %564 = vmatprep.mubr.f32.mxu0 0.0
    %565 = vmatmul.mubr.f32.gmra.mxu0 %v279
    %v566 = vpop.f32.mrf.mxu0
    %v567 = vadd.f32 0.0, %v566
    %v568 = vpop.f32.mrf.mxu0
    %v569 = vadd.f32 0.0, %v568
    %570 = vmatprep.mubr.f32.mxu0 0.0
    %571 = vmatmul.mubr.f32.gmra.mxu0 %v284
    %v572 = vpop.f32.mrf.mxu0
    %v573 = vadd.f32 0.0, %v572
    %v574 = vpop.f32.mrf.mxu0
    %v575 = vadd.f32 0.0, %v574
    %576 = vmatprep.mubr.f32.mxu0 0.0
    %577 = vmatmul.mubr.f32.gmra.mxu0 %v289
    %v578 = vpop.f32.mrf.mxu0
    %v579 = vadd.f32 0.0, %v578
    %v580 = vpop.f32.mrf.mxu0
    %v581 = vadd.f32 0.0, %v580
    %582 = vmatprep.mubr.f32.mxu0 0.0
    %583 = vmatmul.mubr.f32.gmra.mxu0 %v294
    %v584 = vpop.f32.mrf.mxu0
    %v585 = vadd.f32 0.0, %v584
    %v586 = vpop.f32.mrf.mxu0
    %v587 = vadd.f32 0.0, %v586
    %588 = vmatprep.mubr.f32.mxu0 0.0
    %589 = vmatmul.mubr.f32.gmra.mxu0 %v299
    %v590 = vpop.f32.mrf.mxu0
    %v591 = vadd.f32 0.0, %v590
    %v592 = vpop.f32.mrf.mxu0
    %v593 = vadd.f32 0.0, %v592
    %594 = vmatprep.mubr.f32.mxu0 0.0
    %595 = vmatmul.mubr.f32.gmra.mxu0 %v304
    %v596 = vpop.f32.mrf.mxu0
    %v597 = vadd.f32 0.0, %v596
    %v598 = vpop.f32.mrf.mxu0
    %v599 = vadd.f32 0.0, %v598
    %600 = vmatprep.mubr.f32.mxu0 0.0
    %601 = vmatmul.mubr.f32.gmra.mxu0 %v309
    %v602 = vpop.f32.mrf.mxu0
    %v603 = vadd.f32 0.0, %v602
    %v604 = vpop.f32.mrf.mxu0
    %v605 = vadd.f32 0.0, %v604
    %606 = vmatprep.mubr.f32.mxu0 0.0
    %607 = vmatmul.mubr.f32.gmra.mxu0 %v314
    %v608 = vpop.f32.mrf.mxu0
    %v609 = vadd.f32 0.0, %v608
    %v610 = vpop.f32.mrf.mxu0
    %v611 = vadd.f32 0.0, %v610
    %612 = vmatprep.mubr.f32.mxu0 0.0
    %613 = vmatmul.mubr.f32.gmra.mxu0 %v319
    %v614 = vpop.f32.mrf.mxu0
    %v615 = vadd.f32 0.0, %v614
    %v616 = vpop.f32.mrf.mxu0
    %v617 = vadd.f32 0.0, %v616
    %618 = vmatprep.mubr.f32.mxu0 0.0
    %619 = vmatmul.mubr.f32.gmra.mxu0 %v324
    %v620 = vpop.f32.mrf.mxu0
    %v621 = vadd.f32 0.0, %v620
    %v622 = vpop.f32.mrf.mxu0
    %v623 = vadd.f32 0.0, %v622
    %624 = vmatprep.mubr.f32.mxu0 0.0
    %625 = vmatmul.mubr.f32.gmra.mxu0 %v329
    %v626 = vpop.f32.mrf.mxu0
    %v627 = vadd.f32 0.0, %v626
    %v628 = vpop.f32.mrf.mxu0
    %v629 = vadd.f32 0.0, %v628
    %630 = vmatprep.mubr.f32.mxu0 0.0
    %631 = vmatmul.mubr.f32.gmra.mxu0 %v334
    %v632 = vpop.f32.mrf.mxu0
    %v633 = vadd.f32 0.0, %v632
    %v634 = vpop.f32.mrf.mxu0
    %v635 = vadd.f32 0.0, %v634
    %636 = vmatprep.mubr.f32.mxu0 0.0
    %637 = vmatmul.mubr.f32.gmra.mxu0 %v339
    %v638 = vpop.f32.mrf.mxu0
    %v639 = vadd.f32 0.0, %v638
    %v640 = vpop.f32.mrf.mxu0
    %v641 = vadd.f32 0.0, %v640
    %642 = vmatprep.mubr.f32.mxu0 0.0
    %643 = vmatmul.mubr.f32.gmra.mxu0 %v344
    %v644 = vpop.f32.mrf.mxu0
    %v645 = vadd.f32 0.0, %v644
    %v646 = vpop.f32.mrf.mxu0
    %v647 = vadd.f32 0.0, %v646
    %648 = vmatprep.mubr.f32.mxu0 0.0
    %649 = vmatmul.mubr.f32.gmra.mxu0 %v349
    %v650 = vpop.f32.mrf.mxu0
    %v651 = vadd.f32 0.0, %v650
    %v652 = vpop.f32.mrf.mxu0
    %v653 = vadd.f32 0.0, %v652
    %654 = vmatprep.mubr.f32.mxu0 0.0
    %655 = vmatmul.mubr.f32.gmra.mxu0 %v354
    %v656 = vpop.f32.mrf.mxu0
    %v657 = vadd.f32 0.0, %v656
    %v658 = vpop.f32.mrf.mxu0
    %v659 = vadd.f32 0.0, %v658
    %660 = vmatprep.mubr.f32.mxu0 0.0
    %661 = vmatmul.mubr.f32.gmra.mxu0 %v359
    %v662 = vpop.f32.mrf.mxu0
    %v663 = vadd.f32 0.0, %v662
    %v664 = vpop.f32.mrf.mxu0
    %v665 = vadd.f32 0.0, %v664
    %666 = vdwg.mxu0
    %667 = vmatprep.subr.mxu0 0.0
    %668 = vmatpush1.msra.mxu0 %v409
    %669 = vmatprep.subr.mxu0 0.0
    %670 = vmatpush1.msra.mxu0 %v406
    %671 = vmatprep.subr.mxu0 0.0
    %672 = vmatpush1.msra.mxu0 %v403
    %673 = vmatprep.subr.mxu0 0.0
    %674 = vmatpush1.msra.mxu0 %v400
    %675 = vmatprep.subr.mxu0 0.0
    %676 = vmatpush1.msra.mxu0 %v397
    %677 = vmatprep.subr.mxu0 0.0
    %678 = vmatpush1.msra.mxu0 %v394
    %679 = vmatprep.subr.mxu0 0.0
    %680 = vmatpush1.msra.mxu0 %v391
    %681 = vmatprep.subr.mxu0 0.0
    %682 = vmatpush1.msra.mxu0 %v388
    %683 = vmatprep.subr.mxu0 0.0
    %684 = vmatpush1.msra.mxu0 %v385
    %685 = vmatprep.subr.mxu0 0.0
    %686 = vmatpush1.msra.mxu0 %v382
    %687 = vmatprep.subr.mxu0 0.0
    %688 = vmatpush1.msra.mxu0 %v379
    %689 = vmatprep.subr.mxu0 0.0
    %690 = vmatpush1.msra.mxu0 %v376
    %691 = vmatprep.subr.mxu0 0.0
    %692 = vmatpush1.msra.mxu0 %v373
    %693 = vmatprep.subr.mxu0 0.0
    %694 = vmatpush1.msra.mxu0 %v370
    %695 = vmatprep.subr.mxu0 0.0
    %696 = vmatpush1.msra.mxu0 %v367
    %697 = vmatprep.subr.mxu0 0.0
    %698 = vmatpush1.msra.mxu0 %v364
    %699 = vmatprep.subr.mxu0 0.0
    %700 = vmatpush2.msra.mxu0 0.0
    %701 = vmatprep.subr.mxu0 0.0
    %702 = vmatpush2.msra.mxu0 0.0
    %703 = vmatprep.subr.mxu0 0.0
    %704 = vmatpush2.msra.mxu0 0.0
    %705 = vmatprep.subr.mxu0 0.0
    %706 = vmatpush2.msra.mxu0 0.0
    %707 = vmatprep.subr.mxu0 0.0
    %708 = vmatpush2.msra.mxu0 0.0
    %709 = vmatprep.subr.mxu0 0.0
    %710 = vmatpush2.msra.mxu0 0.0
    %711 = vmatprep.subr.mxu0 0.0
    %712 = vmatpush2.msra.mxu0 0.0
    %713 = vmatprep.subr.mxu0 0.0
    %714 = vmatpush2.msra.mxu0 0.0
    %715 = vmatprep.subr.mxu0 0.0
    %716 = vmatpush2.msra.mxu0 0.0
    %717 = vmatprep.subr.mxu0 0.0
    %718 = vmatpush2.msra.mxu0 0.0
    %719 = vmatprep.subr.mxu0 0.0
    %720 = vmatpush2.msra.mxu0 0.0
    %721 = vmatprep.subr.mxu0 0.0
    %722 = vmatpush2.msra.mxu0 0.0
    %723 = vmatprep.subr.mxu0 0.0
    %724 = vmatpush2.msra.mxu0 0.0
    %725 = vmatprep.subr.mxu0 0.0
    %726 = vmatpush2.msra.mxu0 0.0
    %727 = vmatprep.subr.mxu0 0.0
    %728 = vmatpush2.msra.mxu0 0.0
    %729 = vmatprep.subr.mxu0 0.0
    %730 = vmatpush2.msra.mxu0 0.0
    %731 = vmatprep.mubr.f32.mxu0 0.0
    %732 = vmatmul.mubr.f32.gmra.mxu0 %v204
    %v733 = vpop.f32.mrf.mxu0
    %v734 = vadd.f32 0.0, %v733
    %v735 = vpop.f32.mrf.mxu0
    %736 = vmatprep.mubr.f32.mxu0 0.0
    %737 = vmatmul.mubr.f32.gmra.mxu0 %v209
    %v738 = vpop.f32.mrf.mxu0
    %v739 = vadd.f32 0.0, %v738
    %v740 = vpop.f32.mrf.mxu0
    %741 = vmatprep.mubr.f32.mxu0 0.0
    %742 = vmatmul.mubr.f32.gmra.mxu0 %v214
    %v743 = vpop.f32.mrf.mxu0
    %v744 = vadd.f32 0.0, %v743
    %v745 = vpop.f32.mrf.mxu0
    %746 = vmatprep.mubr.f32.mxu0 0.0
    %747 = vmatmul.mubr.f32.gmra.mxu0 %v219
    %v748 = vpop.f32.mrf.mxu0
    %v749 = vadd.f32 0.0, %v748
    %v750 = vpop.f32.mrf.mxu0
    %751 = vmatprep.mubr.f32.mxu0 0.0
    %752 = vmatmul.mubr.f32.gmra.mxu0 %v224
    %v753 = vpop.f32.mrf.mxu0
    %v754 = vadd.f32 0.0, %v753
    %v755 = vpop.f32.mrf.mxu0
    %756 = vmatprep.mubr.f32.mxu0 0.0
    %757 = vmatmul.mubr.f32.gmra.mxu0 %v229
    %v758 = vpop.f32.mrf.mxu0
    %v759 = vadd.f32 0.0, %v758
    %v760 = vpop.f32.mrf.mxu0
    %761 = vmatprep.mubr.f32.mxu0 0.0
    %762 = vmatmul.mubr.f32.gmra.mxu0 %v234
    %v763 = vpop.f32.mrf.mxu0
    %v764 = vadd.f32 0.0, %v763
    %v765 = vpop.f32.mrf.mxu0
    %766 = vmatprep.mubr.f32.mxu0 0.0
    %767 = vmatmul.mubr.f32.gmra.mxu0 %v239
    %v768 = vpop.f32.mrf.mxu0
    %v769 = vadd.f32 0.0, %v768
    %v770 = vpop.f32.mrf.mxu0
    %771 = vmatprep.mubr.f32.mxu0 0.0
    %772 = vmatmul.mubr.f32.gmra.mxu0 %v244
    %v773 = vpop.f32.mrf.mxu0
    %v774 = vadd.f32 0.0, %v773
    %v775 = vpop.f32.mrf.mxu0
    %776 = vmatprep.mubr.f32.mxu0 0.0
    %777 = vmatmul.mubr.f32.gmra.mxu0 %v249
    %v778 = vpop.f32.mrf.mxu0
    %v779 = vadd.f32 0.0, %v778
    %v780 = vpop.f32.mrf.mxu0
    %781 = vmatprep.mubr.f32.mxu0 0.0
    %782 = vmatmul.mubr.f32.gmra.mxu0 %v254
    %v783 = vpop.f32.mrf.mxu0
    %v784 = vadd.f32 0.0, %v783
    %v785 = vpop.f32.mrf.mxu0
    %786 = vmatprep.mubr.f32.mxu0 0.0
    %787 = vmatmul.mubr.f32.gmra.mxu0 %v259
    %v788 = vpop.f32.mrf.mxu0
    %v789 = vadd.f32 0.0, %v788
    %v790 = vpop.f32.mrf.mxu0
    %791 = vmatprep.mubr.f32.mxu0 0.0
    %792 = vmatmul.mubr.f32.gmra.mxu0 %v264
    %v793 = vpop.f32.mrf.mxu0
    %v794 = vadd.f32 0.0, %v793
    %v795 = vpop.f32.mrf.mxu0
    %796 = vmatprep.mubr.f32.mxu0 0.0
    %797 = vmatmul.mubr.f32.gmra.mxu0 %v269
    %v798 = vpop.f32.mrf.mxu0
    %v799 = vadd.f32 0.0, %v798
    %v800 = vpop.f32.mrf.mxu0
    %801 = vmatprep.mubr.f32.mxu0 0.0
    %802 = vmatmul.mubr.f32.gmra.mxu0 %v274
    %v803 = vpop.f32.mrf.mxu0
    %v804 = vadd.f32 0.0, %v803
    %v805 = vpop.f32.mrf.mxu0
    %806 = vmatprep.mubr.f32.mxu0 0.0
    %807 = vmatmul.mubr.f32.gmra.mxu0 %v279
    %v808 = vpop.f32.mrf.mxu0
    %v809 = vadd.f32 0.0, %v808
    %v810 = vpop.f32.mrf.mxu0
    %811 = vmatprep.mubr.f32.mxu0 0.0
    %812 = vmatmul.mubr.f32.gmra.mxu0 %v284
    %v813 = vpop.f32.mrf.mxu0
    %v814 = vadd.f32 0.0, %v813
    %v815 = vpop.f32.mrf.mxu0
    %816 = vmatprep.mubr.f32.mxu0 0.0
    %817 = vmatmul.mubr.f32.gmra.mxu0 %v289
    %v818 = vpop.f32.mrf.mxu0
    %v819 = vadd.f32 0.0, %v818
    %v820 = vpop.f32.mrf.mxu0
    %821 = vmatprep.mubr.f32.mxu0 0.0
    %822 = vmatmul.mubr.f32.gmra.mxu0 %v294
    %v823 = vpop.f32.mrf.mxu0
    %v824 = vadd.f32 0.0, %v823
    %v825 = vpop.f32.mrf.mxu0
    %826 = vmatprep.mubr.f32.mxu0 0.0
    %827 = vmatmul.mubr.f32.gmra.mxu0 %v299
    %v828 = vpop.f32.mrf.mxu0
    %v829 = vadd.f32 0.0, %v828
    %v830 = vpop.f32.mrf.mxu0
    %831 = vmatprep.mubr.f32.mxu0 0.0
    %832 = vmatmul.mubr.f32.gmra.mxu0 %v304
    %v833 = vpop.f32.mrf.mxu0
    %v834 = vadd.f32 0.0, %v833
    %v835 = vpop.f32.mrf.mxu0
    %836 = vmatprep.mubr.f32.mxu0 0.0
    %837 = vmatmul.mubr.f32.gmra.mxu0 %v309
    %v838 = vpop.f32.mrf.mxu0
    %v839 = vadd.f32 0.0, %v838
    %v840 = vpop.f32.mrf.mxu0
    %841 = vmatprep.mubr.f32.mxu0 0.0
    %842 = vmatmul.mubr.f32.gmra.mxu0 %v314
    %v843 = vpop.f32.mrf.mxu0
    %v844 = vadd.f32 0.0, %v843
    %v845 = vpop.f32.mrf.mxu0
    %846 = vmatprep.mubr.f32.mxu0 0.0
    %847 = vmatmul.mubr.f32.gmra.mxu0 %v319
    %v848 = vpop.f32.mrf.mxu0
    %v849 = vadd.f32 0.0, %v848
    %v850 = vpop.f32.mrf.mxu0
    %851 = vmatprep.mubr.f32.mxu0 0.0
    %852 = vmatmul.mubr.f32.gmra.mxu0 %v324
    %v853 = vpop.f32.mrf.mxu0
    %v854 = vadd.f32 0.0, %v853
    %v855 = vpop.f32.mrf.mxu0
    %856 = vmatprep.mubr.f32.mxu0 0.0
    %857 = vmatmul.mubr.f32.gmra.mxu0 %v329
    %v858 = vpop.f32.mrf.mxu0
    %v859 = vadd.f32 0.0, %v858
    %v860 = vpop.f32.mrf.mxu0
    %861 = vmatprep.mubr.f32.mxu0 0.0
    %862 = vmatmul.mubr.f32.gmra.mxu0 %v334
    %v863 = vpop.f32.mrf.mxu0
    %v864 = vadd.f32 0.0, %v863
    %v865 = vpop.f32.mrf.mxu0
    %866 = vmatprep.mubr.f32.mxu0 0.0
    %867 = vmatmul.mubr.f32.gmra.mxu0 %v339
    %v868 = vpop.f32.mrf.mxu0
    %v869 = vadd.f32 0.0, %v868
    %v870 = vpop.f32.mrf.mxu0
    %871 = vmatprep.mubr.f32.mxu0 0.0
    %872 = vmatmul.mubr.f32.gmra.mxu0 %v344
    %v873 = vpop.f32.mrf.mxu0
    %v874 = vadd.f32 0.0, %v873
    %v875 = vpop.f32.mrf.mxu0
    %876 = vmatprep.mubr.f32.mxu0 0.0
    %877 = vmatmul.mubr.f32.gmra.mxu0 %v349
    %v878 = vpop.f32.mrf.mxu0
    %v879 = vadd.f32 0.0, %v878
    %v880 = vpop.f32.mrf.mxu0
    %881 = vmatprep.mubr.f32.mxu0 0.0
    %882 = vmatmul.mubr.f32.gmra.mxu0 %v354
    %v883 = vpop.f32.mrf.mxu0
    %v884 = vadd.f32 0.0, %v883
    %v885 = vpop.f32.mrf.mxu0
    %886 = vmatprep.mubr.f32.mxu0 0.0
    %887 = vmatmul.mubr.f32.gmra.mxu0 %v359
    %v888 = vpop.f32.mrf.mxu0
    %v889 = vadd.f32 0.0, %v888
    %v890 = vpop.f32.mrf.mxu0
    %891 = vdwg.mxu0
    %v892 = vlaneseq
    %v893 = vand.u32 %v892, 127
    %vm894 = vcmp.lt.s32.totalorder %v893, 16
    %v895 = vsel %vm894, 0.0, -1e+30
    %896 = vmatprep.subr.mxu0 0.0
    %897 = vmatpush1.xpose.msra.mxu0 %v569
    %898 = vmatprep.subr.mxu0 0.0
    %899 = vmatpush1.xpose.msra.mxu0 %v563
    %900 = vmatprep.subr.mxu0 0.0
    %901 = vmatpush1.xpose.msra.mxu0 %v557
    %902 = vmatprep.subr.mxu0 0.0
    %903 = vmatpush1.xpose.msra.mxu0 %v551
    %904 = vmatprep.subr.mxu0 0.0
    %905 = vmatpush1.xpose.msra.mxu0 %v545
    %906 = vmatprep.subr.mxu0 0.0
    %907 = vmatpush1.xpose.msra.mxu0 %v539
    %908 = vmatprep.subr.mxu0 0.0
    %909 = vmatpush1.xpose.msra.mxu0 %v533
    %910 = vmatprep.subr.mxu0 0.0
    %911 = vmatpush1.xpose.msra.mxu0 %v527
    %912 = vmatprep.subr.mxu0 0.0
    %913 = vmatpush1.xpose.msra.mxu0 %v521
    %914 = vmatprep.subr.mxu0 0.0
    %915 = vmatpush1.xpose.msra.mxu0 %v515
    %916 = vmatprep.subr.mxu0 0.0
    %917 = vmatpush1.xpose.msra.mxu0 %v509
    %918 = vmatprep.subr.mxu0 0.0
    %919 = vmatpush1.xpose.msra.mxu0 %v503
    %920 = vmatprep.subr.mxu0 0.0
    %921 = vmatpush1.xpose.msra.mxu0 %v497
    %922 = vmatprep.subr.mxu0 0.0
    %923 = vmatpush1.xpose.msra.mxu0 %v491
    %924 = vmatprep.subr.mxu0 0.0
    %925 = vmatpush1.xpose.msra.mxu0 %v485
    %926 = vmatprep.subr.mxu0 0.0
    %927 = vmatpush1.xpose.msra.mxu0 %v479
    %928 = vmatprep.subr.mxu0 0.0
    %929 = vmatpush2.xpose.msra.mxu0 0.0
    %930 = vmatprep.subr.mxu0 0.0
    %931 = vmatpush2.xpose.msra.mxu0 0.0
    %932 = vmatprep.subr.mxu0 0.0
    %933 = vmatpush2.xpose.msra.mxu0 0.0
    %934 = vmatprep.subr.mxu0 0.0
    %935 = vmatpush2.xpose.msra.mxu0 0.0
    %936 = vmatprep.subr.mxu0 0.0
    %937 = vmatpush2.xpose.msra.mxu0 0.0
    %938 = vmatprep.subr.mxu0 0.0
    %939 = vmatpush2.xpose.msra.mxu0 0.0
    %940 = vmatprep.subr.mxu0 0.0
    %941 = vmatpush2.xpose.msra.mxu0 0.0
    %942 = vmatprep.subr.mxu0 0.0
    %943 = vmatpush2.xpose.msra.mxu0 0.0
    %944 = vmatprep.subr.mxu0 0.0
    %945 = vmatpush2.xpose.msra.mxu0 0.0
    %946 = vmatprep.subr.mxu0 0.0
    %947 = vmatpush2.xpose.msra.mxu0 0.0
    %948 = vmatprep.subr.mxu0 0.0
    %949 = vmatpush2.xpose.msra.mxu0 0.0
    %950 = vmatprep.subr.mxu0 0.0
    %951 = vmatpush2.xpose.msra.mxu0 0.0
    %952 = vmatprep.subr.mxu0 0.0
    %953 = vmatpush2.xpose.msra.mxu0 0.0
    %954 = vmatprep.subr.mxu0 0.0
    %955 = vmatpush2.xpose.msra.mxu0 0.0
    %956 = vmatprep.subr.mxu0 0.0
    %957 = vmatpush2.xpose.msra.mxu0 0.0
    %958 = vmatprep.subr.mxu0 0.0
    %959 = vmatpush2.xpose.msra.mxu0 0.0
    %960 = vmatprep.mubr.f32.mxu0 0.0
    %961 = vmatmul.mubr.f32.gmra.mxu0 %v477
    %v962 = vpop.f32.mrf.mxu0
    %v963 = vadd.f32 0.0, %v962
    %v964 = vpop.f32.mrf.mxu0
    %965 = vmatprep.mubr.f32.mxu0 0.0
    %966 = vmatmul.mubr.f32.gmra.mxu0 %v483
    %v967 = vpop.f32.mrf.mxu0
    %v968 = vadd.f32 0.0, %v967
    %v969 = vpop.f32.mrf.mxu0
    %970 = vmatprep.mubr.f32.mxu0 0.0
    %971 = vmatmul.mubr.f32.gmra.mxu0 %v489
    %v972 = vpop.f32.mrf.mxu0
    %v973 = vadd.f32 0.0, %v972
    %v974 = vpop.f32.mrf.mxu0
    %975 = vmatprep.mubr.f32.mxu0 0.0
    %976 = vmatmul.mubr.f32.gmra.mxu0 %v495
    %v977 = vpop.f32.mrf.mxu0
    %v978 = vadd.f32 0.0, %v977
    %v979 = vpop.f32.mrf.mxu0
    %980 = vmatprep.mubr.f32.mxu0 0.0
    %981 = vmatmul.mubr.f32.gmra.mxu0 %v501
    %v982 = vpop.f32.mrf.mxu0
    %v983 = vadd.f32 0.0, %v982
    %v984 = vpop.f32.mrf.mxu0
    %985 = vmatprep.mubr.f32.mxu0 0.0
    %986 = vmatmul.mubr.f32.gmra.mxu0 %v507
    %v987 = vpop.f32.mrf.mxu0
    %v988 = vadd.f32 0.0, %v987
    %v989 = vpop.f32.mrf.mxu0
    %990 = vmatprep.mubr.f32.mxu0 0.0
    %991 = vmatmul.mubr.f32.gmra.mxu0 %v513
    %v992 = vpop.f32.mrf.mxu0
    %v993 = vadd.f32 0.0, %v992
    %v994 = vpop.f32.mrf.mxu0
    %995 = vmatprep.mubr.f32.mxu0 0.0
    %996 = vmatmul.mubr.f32.gmra.mxu0 %v519
    %v997 = vpop.f32.mrf.mxu0
    %v998 = vadd.f32 0.0, %v997
    %v999 = vpop.f32.mrf.mxu0
    %1000 = vmatprep.mubr.f32.mxu0 0.0
    %1001 = vmatmul.mubr.f32.gmra.mxu0 %v525
    %v1002 = vpop.f32.mrf.mxu0
    %v1003 = vadd.f32 0.0, %v1002
    %v1004 = vpop.f32.mrf.mxu0
    %1005 = vmatprep.mubr.f32.mxu0 0.0
    %1006 = vmatmul.mubr.f32.gmra.mxu0 %v531
    %v1007 = vpop.f32.mrf.mxu0
    %v1008 = vadd.f32 0.0, %v1007
    %v1009 = vpop.f32.mrf.mxu0
    %1010 = vmatprep.mubr.f32.mxu0 0.0
    %1011 = vmatmul.mubr.f32.gmra.mxu0 %v537
    %v1012 = vpop.f32.mrf.mxu0
    %v1013 = vadd.f32 0.0, %v1012
    %v1014 = vpop.f32.mrf.mxu0
    %1015 = vmatprep.mubr.f32.mxu0 0.0
    %1016 = vmatmul.mubr.f32.gmra.mxu0 %v543
    %v1017 = vpop.f32.mrf.mxu0
    %v1018 = vadd.f32 0.0, %v1017
    %v1019 = vpop.f32.mrf.mxu0
    %1020 = vmatprep.mubr.f32.mxu0 0.0
    %1021 = vmatmul.mubr.f32.gmra.mxu0 %v549
    %v1022 = vpop.f32.mrf.mxu0
    %v1023 = vadd.f32 0.0, %v1022
    %v1024 = vpop.f32.mrf.mxu0
    %1025 = vmatprep.mubr.f32.mxu0 0.0
    %1026 = vmatmul.mubr.f32.gmra.mxu0 %v555
    %v1027 = vpop.f32.mrf.mxu0
    %v1028 = vadd.f32 0.0, %v1027
    %v1029 = vpop.f32.mrf.mxu0
    %1030 = vmatprep.mubr.f32.mxu0 0.0
    %1031 = vmatmul.mubr.f32.gmra.mxu0 %v561
    %v1032 = vpop.f32.mrf.mxu0
    %v1033 = vadd.f32 0.0, %v1032
    %v1034 = vpop.f32.mrf.mxu0
    %1035 = vmatprep.mubr.f32.mxu0 0.0
    %1036 = vmatmul.mubr.f32.gmra.mxu0 %v567
    %v1037 = vpop.f32.mrf.mxu0
    %v1038 = vadd.f32 0.0, %v1037
    %v1039 = vpop.f32.mrf.mxu0
    %1040 = vdwg.mxu0
    %v1041 = vmul.f32 %v963, 0.25
    %v1042 = vmul.f32 %v968, 0.25
    %v1043 = vmul.f32 %v973, 0.25
    %v1044 = vmul.f32 %v978, 0.25
    %v1045 = vmul.f32 %v983, 0.25
    %v1046 = vmul.f32 %v988, 0.25
    %v1047 = vmul.f32 %v993, 0.25
    %v1048 = vmul.f32 %v998, 0.25
    %v1049 = vmul.f32 %v1003, 0.25
    %v1050 = vmul.f32 %v1008, 0.25
    %v1051 = vmul.f32 %v1013, 0.25
    %v1052 = vmul.f32 %v1018, 0.25
    %v1053 = vmul.f32 %v1023, 0.25
    %v1054 = vmul.f32 %v1028, 0.25
    %v1055 = vmul.f32 %v1033, 0.25
    %v1056 = vmul.f32 %v1038, 0.25
    %v1057 = vadd.f32 %v1041, %v895
    %v1058 = vadd.f32 %v1042, %v895
    %v1059 = vadd.f32 %v1043, %v895
    %v1060 = vadd.f32 %v1044, %v895
    %v1061 = vadd.f32 %v1045, %v895
    %v1062 = vadd.f32 %v1046, %v895
    %v1063 = vadd.f32 %v1047, %v895
    %v1064 = vadd.f32 %v1048, %v895
    %v1065 = vadd.f32 %v1049, %v895
    %v1066 = vadd.f32 %v1050, %v895
    %v1067 = vadd.f32 %v1051, %v895
    %v1068 = vadd.f32 %v1052, %v895
    %v1069 = vadd.f32 %v1053, %v895
    %v1070 = vadd.f32 %v1054, %v895
    %v1071 = vadd.f32 %v1055, %v895
    %v1072 = vadd.f32 %v1056, %v895
    %1073 = vmax.xlane.f32.xlu0 %v1057
    %v1074 = vpop.xlane.xlu0 %1073
    %1075 = vmax.xlane.f32.xlu0 %v1058
    %v1076 = vpop.xlane.xlu0 %1075
    %1077 = vmax.xlane.f32.xlu0 %v1059
    %v1078 = vpop.xlane.xlu0 %1077
    %1079 = vmax.xlane.f32.xlu0 %v1060
    %v1080 = vpop.xlane.xlu0 %1079
    %1081 = vmax.xlane.f32.xlu0 %v1061
    %v1082 = vpop.xlane.xlu0 %1081
    %1083 = vmax.xlane.f32.xlu0 %v1062
    %v1084 = vpop.xlane.xlu0 %1083
    %1085 = vmax.xlane.f32.xlu0 %v1063
    %v1086 = vpop.xlane.xlu0 %1085
    %1087 = vmax.xlane.f32.xlu0 %v1064
    %v1088 = vpop.xlane.xlu0 %1087
    %1089 = vmax.xlane.f32.xlu0 %v1065
    %v1090 = vpop.xlane.xlu0 %1089
    %1091 = vmax.xlane.f32.xlu0 %v1066
    %v1092 = vpop.xlane.xlu0 %1091
    %1093 = vmax.xlane.f32.xlu0 %v1067
    %v1094 = vpop.xlane.xlu0 %1093
    %1095 = vmax.xlane.f32.xlu0 %v1068
    %v1096 = vpop.xlane.xlu0 %1095
    %1097 = vmax.xlane.f32.xlu0 %v1069
    %v1098 = vpop.xlane.xlu0 %1097
    %1099 = vmax.xlane.f32.xlu0 %v1070
    %v1100 = vpop.xlane.xlu0 %1099
    %1101 = vmax.xlane.f32.xlu0 %v1071
    %v1102 = vpop.xlane.xlu0 %1101
    %1103 = vmax.xlane.f32.xlu0 %v1072
    %v1104 = vpop.xlane.xlu0 %1103
    %v1105 = vsub.f32 %v1057, %v1074
    %v1106 = vsub.f32 %v1058, %v1076
    %v1107 = vsub.f32 %v1059, %v1078
    %v1108 = vsub.f32 %v1060, %v1080
    %v1109 = vsub.f32 %v1061, %v1082
    %v1110 = vsub.f32 %v1062, %v1084
    %v1111 = vsub.f32 %v1063, %v1086
    %v1112 = vsub.f32 %v1064, %v1088
    %v1113 = vsub.f32 %v1065, %v1090
    %v1114 = vsub.f32 %v1066, %v1092
    %v1115 = vsub.f32 %v1067, %v1094
    %v1116 = vsub.f32 %v1068, %v1096
    %v1117 = vsub.f32 %v1069, %v1098
    %v1118 = vsub.f32 %v1070, %v1100
    %v1119 = vsub.f32 %v1071, %v1102
    %v1120 = vsub.f32 %v1072, %v1104
    %v1121 = vmul.f32 %v1105, 1.442695
    %v1122 = vpow.pop %v1121
    %v1123 = vmul.f32 %v1106, 1.442695
    %v1124 = vpow.pop %v1123
    %v1125 = vmul.f32 %v1107, 1.442695
    %v1126 = vpow.pop %v1125
    %v1127 = vmul.f32 %v1108, 1.442695
    %v1128 = vpow.pop %v1127
    %v1129 = vmul.f32 %v1109, 1.442695
    %v1130 = vpow.pop %v1129
    %v1131 = vmul.f32 %v1110, 1.442695
    %v1132 = vpow.pop %v1131
    %v1133 = vmul.f32 %v1111, 1.442695
    %v1134 = vpow.pop %v1133
    %v1135 = vmul.f32 %v1112, 1.442695
    %v1136 = vpow.pop %v1135
    %v1137 = vmul.f32 %v1113, 1.442695
    %v1138 = vpow.pop %v1137
    %v1139 = vmul.f32 %v1114, 1.442695
    %v1140 = vpow.pop %v1139
    %v1141 = vmul.f32 %v1115, 1.442695
    %v1142 = vpow.pop %v1141
    %v1143 = vmul.f32 %v1116, 1.442695
    %v1144 = vpow.pop %v1143
    %v1145 = vmul.f32 %v1117, 1.442695
    %v1146 = vpow.pop %v1145
    %v1147 = vmul.f32 %v1118, 1.442695
    %v1148 = vpow.pop %v1147
    %v1149 = vmul.f32 %v1119, 1.442695
    %v1150 = vpow.pop %v1149
    %v1151 = vmul.f32 %v1120, 1.442695
    %v1152 = vpow.pop %v1151
    %1153 = vadd.xlane.f32.xlu0 %v1122
    %v1154 = vpop.xlane.xlu0 %1153
    %1155 = vadd.xlane.f32.xlu0 %v1124
    %v1156 = vpop.xlane.xlu0 %1155
    %1157 = vadd.xlane.f32.xlu0 %v1126
    %v1158 = vpop.xlane.xlu0 %1157
    %1159 = vadd.xlane.f32.xlu0 %v1128
    %v1160 = vpop.xlane.xlu0 %1159
    %1161 = vadd.xlane.f32.xlu0 %v1130
    %v1162 = vpop.xlane.xlu0 %1161
    %1163 = vadd.xlane.f32.xlu0 %v1132
    %v1164 = vpop.xlane.xlu0 %1163
    %1165 = vadd.xlane.f32.xlu0 %v1134
    %v1166 = vpop.xlane.xlu0 %1165
    %1167 = vadd.xlane.f32.xlu0 %v1136
    %v1168 = vpop.xlane.xlu0 %1167
    %1169 = vadd.xlane.f32.xlu0 %v1138
    %v1170 = vpop.xlane.xlu0 %1169
    %1171 = vadd.xlane.f32.xlu0 %v1140
    %v1172 = vpop.xlane.xlu0 %1171
    %1173 = vadd.xlane.f32.xlu0 %v1142
    %v1174 = vpop.xlane.xlu0 %1173
    %1175 = vadd.xlane.f32.xlu0 %v1144
    %v1176 = vpop.xlane.xlu0 %1175
    %1177 = vadd.xlane.f32.xlu0 %v1146
    %v1178 = vpop.xlane.xlu0 %1177
    %1179 = vadd.xlane.f32.xlu0 %v1148
    %v1180 = vpop.xlane.xlu0 %1179
    %1181 = vadd.xlane.f32.xlu0 %v1150
    %v1182 = vpop.xlane.xlu0 %1181
    %1183 = vadd.xlane.f32.xlu0 %v1152
    %v1184 = vpop.xlane.xlu0 %1183
    %v1185 = vrcp.pop %v1154
    %v1186 = vrcp.pop %v1156
    %v1187 = vrcp.pop %v1158
    %v1188 = vrcp.pop %v1160
    %v1189 = vrcp.pop %v1162
    %v1190 = vrcp.pop %v1164
    %v1191 = vrcp.pop %v1166
    %v1192 = vrcp.pop %v1168
    %v1193 = vrcp.pop %v1170
    %v1194 = vrcp.pop %v1172
    %v1195 = vrcp.pop %v1174
    %v1196 = vrcp.pop %v1176
    %v1197 = vrcp.pop %v1178
    %v1198 = vrcp.pop %v1180
    %v1199 = vrcp.pop %v1182
    %v1200 = vrcp.pop %v1184
    %v1201 = vmul.f32 %v1122, %v1185
    %v1202 = vmul.f32 %v1124, %v1186
    %v1203 = vmul.f32 %v1126, %v1187
    %v1204 = vmul.f32 %v1128, %v1188
    %v1205 = vmul.f32 %v1130, %v1189
    %v1206 = vmul.f32 %v1132, %v1190
    %v1207 = vmul.f32 %v1134, %v1191
    %v1208 = vmul.f32 %v1136, %v1192
    %v1209 = vmul.f32 %v1138, %v1193
    %v1210 = vmul.f32 %v1140, %v1194
    %v1211 = vmul.f32 %v1142, %v1195
    %v1212 = vmul.f32 %v1144, %v1196
    %v1213 = vmul.f32 %v1146, %v1197
    %v1214 = vmul.f32 %v1148, %v1198
    %v1215 = vmul.f32 %v1150, %v1199
    %v1216 = vmul.f32 %v1152, %v1200
    %1217 = vst [vmem:[#allocation11] sm:$0xff] %v1201
    %1218 = vst [vmem:[#allocation11 + $0x8] sm:$0xff] %v1202
    %1219 = vst [vmem:[#allocation11 + $0x10] sm:$0xff] %v1203
    %1220 = vst [vmem:[#allocation11 + $0x18] sm:$0xff] %v1204
    %1221 = vst [vmem:[#allocation11 + $0x20] sm:$0xff] %v1205
    %1222 = vst [vmem:[#allocation11 + $0x28] sm:$0xff] %v1206
    %1223 = vst [vmem:[#allocation11 + $0x30] sm:$0xff] %v1207
    %1224 = vst [vmem:[#allocation11 + $0x38] sm:$0xff] %v1208
    %1225 = vst [vmem:[#allocation11 + $0x40] sm:$0xff] %v1209
    %1226 = vst [vmem:[#allocation11 + $0x48] sm:$0xff] %v1210
    %1227 = vst [vmem:[#allocation11 + $0x50] sm:$0xff] %v1211
    %1228 = vst [vmem:[#allocation11 + $0x58] sm:$0xff] %v1212
    %1229 = vst [vmem:[#allocation11 + $0x60] sm:$0xff] %v1213
    %1230 = vst [vmem:[#allocation11 + $0x68] sm:$0xff] %v1214
    %1231 = vst [vmem:[#allocation11 + $0x70] sm:$0xff] %v1215
    %1232 = vst [vmem:[#allocation11 + $0x78] sm:$0xff] %v1216
    %1233 = vmatprep.subr.mxu0 0.0
    %1234 = vmatpush1.msra.mxu0 %v809
    %1235 = vmatprep.subr.mxu0 0.0
    %1236 = vmatpush1.msra.mxu0 %v804
    %1237 = vmatprep.subr.mxu0 0.0
    %1238 = vmatpush1.msra.mxu0 %v799
    %1239 = vmatprep.subr.mxu0 0.0
    %1240 = vmatpush1.msra.mxu0 %v794
    %1241 = vmatprep.subr.mxu0 0.0
    %1242 = vmatpush1.msra.mxu0 %v789
    %1243 = vmatprep.subr.mxu0 0.0
    %1244 = vmatpush1.msra.mxu0 %v784
    %1245 = vmatprep.subr.mxu0 0.0
    %1246 = vmatpush1.msra.mxu0 %v779
    %1247 = vmatprep.subr.mxu0 0.0
    %1248 = vmatpush1.msra.mxu0 %v774
    %1249 = vmatprep.subr.mxu0 0.0
    %1250 = vmatpush1.msra.mxu0 %v769
    %1251 = vmatprep.subr.mxu0 0.0
    %1252 = vmatpush1.msra.mxu0 %v764
    %1253 = vmatprep.subr.mxu0 0.0
    %1254 = vmatpush1.msra.mxu0 %v759
    %1255 = vmatprep.subr.mxu0 0.0
    %1256 = vmatpush1.msra.mxu0 %v754
    %1257 = vmatprep.subr.mxu0 0.0
    %1258 = vmatpush1.msra.mxu0 %v749
    %1259 = vmatprep.subr.mxu0 0.0
    %1260 = vmatpush1.msra.mxu0 %v744
    %1261 = vmatprep.subr.mxu0 0.0
    %1262 = vmatpush1.msra.mxu0 %v739
    %1263 = vmatprep.subr.mxu0 0.0
    %1264 = vmatpush1.msra.mxu0 %v734
    %1265 = vmatprep.subr.mxu0 0.0
    %1266 = vmatpush2.msra.mxu0 0.0
    %1267 = vmatprep.subr.mxu0 0.0
    %1268 = vmatpush2.msra.mxu0 0.0
    %1269 = vmatprep.subr.mxu0 0.0
    %1270 = vmatpush2.msra.mxu0 0.0
    %1271 = vmatprep.subr.mxu0 0.0
    %1272 = vmatpush2.msra.mxu0 0.0
    %1273 = vmatprep.subr.mxu0 0.0
    %1274 = vmatpush2.msra.mxu0 0.0
    %1275 = vmatprep.subr.mxu0 0.0
    %1276 = vmatpush2.msra.mxu0 0.0
    %1277 = vmatprep.subr.mxu0 0.0
    %1278 = vmatpush2.msra.mxu0 0.0
    %1279 = vmatprep.subr.mxu0 0.0
    %1280 = vmatpush2.msra.mxu0 0.0
    %1281 = vmatprep.subr.mxu0 0.0
    %1282 = vmatpush2.msra.mxu0 0.0
    %1283 = vmatprep.subr.mxu0 0.0
    %1284 = vmatpush2.msra.mxu0 0.0
    %1285 = vmatprep.subr.mxu0 0.0
    %1286 = vmatpush2.msra.mxu0 0.0
    %1287 = vmatprep.subr.mxu0 0.0
    %1288 = vmatpush2.msra.mxu0 0.0
    %1289 = vmatprep.subr.mxu0 0.0
    %1290 = vmatpush2.msra.mxu0 0.0
    %1291 = vmatprep.subr.mxu0 0.0
    %1292 = vmatpush2.msra.mxu0 0.0
    %1293 = vmatprep.subr.mxu0 0.0
    %1294 = vmatpush2.msra.mxu0 0.0
    %1295 = vmatprep.subr.mxu0 0.0
    %1296 = vmatpush2.msra.mxu0 0.0
    %1297 = vmatprep.mubr.f32.mxu0 0.0
    %1298 = vmatmul.mubr.f32.gmra.mxu0 %v1201
    %v1299 = vpop.f32.mrf.mxu0
    %v1300 = vadd.f32 0.0, %v1299
    %v1301 = vpop.f32.mrf.mxu0
    %1302 = vmatprep.mubr.f32.mxu0 0.0
    %1303 = vmatmul.mubr.f32.gmra.mxu0 %v1202
    %v1304 = vpop.f32.mrf.mxu0
    %v1305 = vadd.f32 0.0, %v1304
    %v1306 = vpop.f32.mrf.mxu0
    %1307 = vmatprep.mubr.f32.mxu0 0.0
    %1308 = vmatmul.mubr.f32.gmra.mxu0 %v1203
    %v1309 = vpop.f32.mrf.mxu0
    %v1310 = vadd.f32 0.0, %v1309
    %v1311 = vpop.f32.mrf.mxu0
    %1312 = vmatprep.mubr.f32.mxu0 0.0
    %1313 = vmatmul.mubr.f32.gmra.mxu0 %v1204
    %v1314 = vpop.f32.mrf.mxu0
    %v1315 = vadd.f32 0.0, %v1314
    %v1316 = vpop.f32.mrf.mxu0
    %1317 = vmatprep.mubr.f32.mxu0 0.0
    %1318 = vmatmul.mubr.f32.gmra.mxu0 %v1205
    %v1319 = vpop.f32.mrf.mxu0
    %v1320 = vadd.f32 0.0, %v1319
    %v1321 = vpop.f32.mrf.mxu0
    %1322 = vmatprep.mubr.f32.mxu0 0.0
    %1323 = vmatmul.mubr.f32.gmra.mxu0 %v1206
    %v1324 = vpop.f32.mrf.mxu0
    %v1325 = vadd.f32 0.0, %v1324
    %v1326 = vpop.f32.mrf.mxu0
    %1327 = vmatprep.mubr.f32.mxu0 0.0
    %1328 = vmatmul.mubr.f32.gmra.mxu0 %v1207
    %v1329 = vpop.f32.mrf.mxu0
    %v1330 = vadd.f32 0.0, %v1329
    %v1331 = vpop.f32.mrf.mxu0
    %1332 = vmatprep.mubr.f32.mxu0 0.0
    %1333 = vmatmul.mubr.f32.gmra.mxu0 %v1208
    %v1334 = vpop.f32.mrf.mxu0
    %v1335 = vadd.f32 0.0, %v1334
    %v1336 = vpop.f32.mrf.mxu0
    %1337 = vmatprep.mubr.f32.mxu0 0.0
    %1338 = vmatmul.mubr.f32.gmra.mxu0 %v1209
    %v1339 = vpop.f32.mrf.mxu0
    %v1340 = vadd.f32 0.0, %v1339
    %v1341 = vpop.f32.mrf.mxu0
    %1342 = vmatprep.mubr.f32.mxu0 0.0
    %1343 = vmatmul.mubr.f32.gmra.mxu0 %v1210
    %v1344 = vpop.f32.mrf.mxu0
    %v1345 = vadd.f32 0.0, %v1344
    %v1346 = vpop.f32.mrf.mxu0
    %1347 = vmatprep.mubr.f32.mxu0 0.0
    %1348 = vmatmul.mubr.f32.gmra.mxu0 %v1211
    %v1349 = vpop.f32.mrf.mxu0
    %v1350 = vadd.f32 0.0, %v1349
    %v1351 = vpop.f32.mrf.mxu0
    %1352 = vmatprep.mubr.f32.mxu0 0.0
    %1353 = vmatmul.mubr.f32.gmra.mxu0 %v1212
    %v1354 = vpop.f32.mrf.mxu0
    %v1355 = vadd.f32 0.0, %v1354
    %v1356 = vpop.f32.mrf.mxu0
    %1357 = vmatprep.mubr.f32.mxu0 0.0
    %1358 = vmatmul.mubr.f32.gmra.mxu0 %v1213
    %v1359 = vpop.f32.mrf.mxu0
    %v1360 = vadd.f32 0.0, %v1359
    %v1361 = vpop.f32.mrf.mxu0
    %1362 = vmatprep.mubr.f32.mxu0 0.0
    %1363 = vmatmul.mubr.f32.gmra.mxu0 %v1214
    %v1364 = vpop.f32.mrf.mxu0
    %v1365 = vadd.f32 0.0, %v1364
    %v1366 = vpop.f32.mrf.mxu0
    %1367 = vmatprep.mubr.f32.mxu0 0.0
    %1368 = vmatmul.mubr.f32.gmra.mxu0 %v1215
    %v1369 = vpop.f32.mrf.mxu0
    %v1370 = vadd.f32 0.0, %v1369
    %v1371 = vpop.f32.mrf.mxu0
    %1372 = vmatprep.mubr.f32.mxu0 0.0
    %1373 = vmatmul.mubr.f32.gmra.mxu0 %v1216
    %v1374 = vpop.f32.mrf.mxu0
    %v1375 = vadd.f32 0.0, %v1374
    %v1376 = vpop.f32.mrf.mxu0
    %1377 = vdwg.mxu0
    %1378 = vst [vmem:[#allocation2] sm:$0xff] %v1300
    %1379 = vst [vmem:[#allocation2 + $0x8] sm:$0xff] %v1305
    %1380 = vst [vmem:[#allocation2 + $0x10] sm:$0xff] %v1310
    %1381 = vst [vmem:[#allocation2 + $0x18] sm:$0xff] %v1315
    %1382 = vst [vmem:[#allocation2 + $0x20] sm:$0xff] %v1320
    %1383 = vst [vmem:[#allocation2 + $0x28] sm:$0xff] %v1325
    %1384 = vst [vmem:[#allocation2 + $0x30] sm:$0xff] %v1330
    %1385 = vst [vmem:[#allocation2 + $0x38] sm:$0xff] %v1335
    %1386 = vst [vmem:[#allocation2 + $0x40] sm:$0xff] %v1340
    %1387 = vst [vmem:[#allocation2 + $0x48] sm:$0xff] %v1345
    %1388 = vst [vmem:[#allocation2 + $0x50] sm:$0xff] %v1350
    %1389 = vst [vmem:[#allocation2 + $0x58] sm:$0xff] %v1355
    %1390 = vst [vmem:[#allocation2 + $0x60] sm:$0xff] %v1360
    %1391 = vst [vmem:[#allocation2 + $0x68] sm:$0xff] %v1365
    %1392 = vst [vmem:[#allocation2 + $0x70] sm:$0xff] %v1370
    %1393 = vst [vmem:[#allocation2 + $0x78] sm:$0xff] %v1375
    %1394 = vmatprep.subr.mxu0 0.0
    %1395 = vmatpush1.xpose.msra.mxu0 %v665
    %1396 = vmatprep.subr.mxu0 0.0
    %1397 = vmatpush1.xpose.msra.mxu0 %v659
    %1398 = vmatprep.subr.mxu0 0.0
    %1399 = vmatpush1.xpose.msra.mxu0 %v653
    %1400 = vmatprep.subr.mxu0 0.0
    %1401 = vmatpush1.xpose.msra.mxu0 %v647
    %1402 = vmatprep.subr.mxu0 0.0
    %1403 = vmatpush1.xpose.msra.mxu0 %v641
    %1404 = vmatprep.subr.mxu0 0.0
    %1405 = vmatpush1.xpose.msra.mxu0 %v635
    %1406 = vmatprep.subr.mxu0 0.0
    %1407 = vmatpush1.xpose.msra.mxu0 %v629
    %1408 = vmatprep.subr.mxu0 0.0
    %1409 = vmatpush1.xpose.msra.mxu0 %v623
    %1410 = vmatprep.subr.mxu0 0.0
    %1411 = vmatpush1.xpose.msra.mxu0 %v617
    %1412 = vmatprep.subr.mxu0 0.0
    %1413 = vmatpush1.xpose.msra.mxu0 %v611
    %1414 = vmatprep.subr.mxu0 0.0
    %1415 = vmatpush1.xpose.msra.mxu0 %v605
    %1416 = vmatprep.subr.mxu0 0.0
    %1417 = vmatpush1.xpose.msra.mxu0 %v599
    %1418 = vmatprep.subr.mxu0 0.0
    %1419 = vmatpush1.xpose.msra.mxu0 %v593
    %1420 = vmatprep.subr.mxu0 0.0
    %1421 = vmatpush1.xpose.msra.mxu0 %v587
    %1422 = vmatprep.subr.mxu0 0.0
    %1423 = vmatpush1.xpose.msra.mxu0 %v581
    %1424 = vmatprep.subr.mxu0 0.0
    %1425 = vmatpush1.xpose.msra.mxu0 %v575
    %1426 = vmatprep.subr.mxu0 0.0
    %1427 = vmatpush2.xpose.msra.mxu0 0.0
    %1428 = vmatprep.subr.mxu0 0.0
    %1429 = vmatpush2.xpose.msra.mxu0 0.0
    %1430 = vmatprep.subr.mxu0 0.0
    %1431 = vmatpush2.xpose.msra.mxu0 0.0
    %1432 = vmatprep.subr.mxu0 0.0
    %1433 = vmatpush2.xpose.msra.mxu0 0.0
    %1434 = vmatprep.subr.mxu0 0.0
    %1435 = vmatpush2.xpose.msra.mxu0 0.0
    %1436 = vmatprep.subr.mxu0 0.0
    %1437 = vmatpush2.xpose.msra.mxu0 0.0
    %1438 = vmatprep.subr.mxu0 0.0
    %1439 = vmatpush2.xpose.msra.mxu0 0.0
    %1440 = vmatprep.subr.mxu0 0.0
    %1441 = vmatpush2.xpose.msra.mxu0 0.0
    %1442 = vmatprep.subr.mxu0 0.0
    %1443 = vmatpush2.xpose.msra.mxu0 0.0
    %1444 = vmatprep.subr.mxu0 0.0
    %1445 = vmatpush2.xpose.msra.mxu0 0.0
    %1446 = vmatprep.subr.mxu0 0.0
    %1447 = vmatpush2.xpose.msra.mxu0 0.0
    %1448 = vmatprep.subr.mxu0 0.0
    %1449 = vmatpush2.xpose.msra.mxu0 0.0
    %1450 = vmatprep.subr.mxu0 0.0
    %1451 = vmatpush2.xpose.msra.mxu0 0.0
    %1452 = vmatprep.subr.mxu0 0.0
    %1453 = vmatpush2.xpose.msra.mxu0 0.0
    %1454 = vmatprep.subr.mxu0 0.0
    %1455 = vmatpush2.xpose.msra.mxu0 0.0
    %1456 = vmatprep.subr.mxu0 0.0
    %1457 = vmatpush2.xpose.msra.mxu0 0.0
    %1458 = vmatprep.mubr.f32.mxu0 0.0
    %1459 = vmatmul.mubr.f32.gmra.mxu0 %v573
    %v1460 = vpop.f32.mrf.mxu0
    %v1461 = vadd.f32 0.0, %v1460
    %v1462 = vpop.f32.mrf.mxu0
    %1463 = vmatprep.mubr.f32.mxu0 0.0
    %1464 = vmatmul.mubr.f32.gmra.mxu0 %v579
    %v1465 = vpop.f32.mrf.mxu0
    %v1466 = vadd.f32 0.0, %v1465
    %v1467 = vpop.f32.mrf.mxu0
    %1468 = vmatprep.mubr.f32.mxu0 0.0
    %1469 = vmatmul.mubr.f32.gmra.mxu0 %v585
    %v1470 = vpop.f32.mrf.mxu0
    %v1471 = vadd.f32 0.0, %v1470
    %v1472 = vpop.f32.mrf.mxu0
    %1473 = vmatprep.mubr.f32.mxu0 0.0
    %1474 = vmatmul.mubr.f32.gmra.mxu0 %v591
    %v1475 = vpop.f32.mrf.mxu0
    %v1476 = vadd.f32 0.0, %v1475
    %v1477 = vpop.f32.mrf.mxu0
    %1478 = vmatprep.mubr.f32.mxu0 0.0
    %1479 = vmatmul.mubr.f32.gmra.mxu0 %v597
    %v1480 = vpop.f32.mrf.mxu0
    %v1481 = vadd.f32 0.0, %v1480
    %v1482 = vpop.f32.mrf.mxu0
    %1483 = vmatprep.mubr.f32.mxu0 0.0
    %1484 = vmatmul.mubr.f32.gmra.mxu0 %v603
    %v1485 = vpop.f32.mrf.mxu0
    %v1486 = vadd.f32 0.0, %v1485
    %v1487 = vpop.f32.mrf.mxu0
    %1488 = vmatprep.mubr.f32.mxu0 0.0
    %1489 = vmatmul.mubr.f32.gmra.mxu0 %v609
    %v1490 = vpop.f32.mrf.mxu0
    %v1491 = vadd.f32 0.0, %v1490
    %v1492 = vpop.f32.mrf.mxu0
    %1493 = vmatprep.mubr.f32.mxu0 0.0
    %1494 = vmatmul.mubr.f32.gmra.mxu0 %v615
    %v1495 = vpop.f32.mrf.mxu0
    %v1496 = vadd.f32 0.0, %v1495
    %v1497 = vpop.f32.mrf.mxu0
    %1498 = vmatprep.mubr.f32.mxu0 0.0
    %1499 = vmatmul.mubr.f32.gmra.mxu0 %v621
    %v1500 = vpop.f32.mrf.mxu0
    %v1501 = vadd.f32 0.0, %v1500
    %v1502 = vpop.f32.mrf.mxu0
    %1503 = vmatprep.mubr.f32.mxu0 0.0
    %1504 = vmatmul.mubr.f32.gmra.mxu0 %v627
    %v1505 = vpop.f32.mrf.mxu0
    %v1506 = vadd.f32 0.0, %v1505
    %v1507 = vpop.f32.mrf.mxu0
    %1508 = vmatprep.mubr.f32.mxu0 0.0
    %1509 = vmatmul.mubr.f32.gmra.mxu0 %v633
    %v1510 = vpop.f32.mrf.mxu0
    %v1511 = vadd.f32 0.0, %v1510
    %v1512 = vpop.f32.mrf.mxu0
    %1513 = vmatprep.mubr.f32.mxu0 0.0
    %1514 = vmatmul.mubr.f32.gmra.mxu0 %v639
    %v1515 = vpop.f32.mrf.mxu0
    %v1516 = vadd.f32 0.0, %v1515
    %v1517 = vpop.f32.mrf.mxu0
    %1518 = vmatprep.mubr.f32.mxu0 0.0
    %1519 = vmatmul.mubr.f32.gmra.mxu0 %v645
    %v1520 = vpop.f32.mrf.mxu0
    %v1521 = vadd.f32 0.0, %v1520
    %v1522 = vpop.f32.mrf.mxu0
    %1523 = vmatprep.mubr.f32.mxu0 0.0
    %1524 = vmatmul.mubr.f32.gmra.mxu0 %v651
    %v1525 = vpop.f32.mrf.mxu0
    %v1526 = vadd.f32 0.0, %v1525
    %v1527 = vpop.f32.mrf.mxu0
    %1528 = vmatprep.mubr.f32.mxu0 0.0
    %1529 = vmatmul.mubr.f32.gmra.mxu0 %v657
    %v1530 = vpop.f32.mrf.mxu0
    %v1531 = vadd.f32 0.0, %v1530
    %v1532 = vpop.f32.mrf.mxu0
    %1533 = vmatprep.mubr.f32.mxu0 0.0
    %1534 = vmatmul.mubr.f32.gmra.mxu0 %v663
    %v1535 = vpop.f32.mrf.mxu0
    %v1536 = vadd.f32 0.0, %v1535
    %v1537 = vpop.f32.mrf.mxu0
    %1538 = vdwg.mxu0
    %v1539 = vmul.f32 %v1461, 0.25
    %v1540 = vmul.f32 %v1466, 0.25
    %v1541 = vmul.f32 %v1471, 0.25
    %v1542 = vmul.f32 %v1476, 0.25
    %v1543 = vmul.f32 %v1481, 0.25
    %v1544 = vmul.f32 %v1486, 0.25
    %v1545 = vmul.f32 %v1491, 0.25
    %v1546 = vmul.f32 %v1496, 0.25
    %v1547 = vmul.f32 %v1501, 0.25
    %v1548 = vmul.f32 %v1506, 0.25
    %v1549 = vmul.f32 %v1511, 0.25
    %v1550 = vmul.f32 %v1516, 0.25
    %v1551 = vmul.f32 %v1521, 0.25
    %v1552 = vmul.f32 %v1526, 0.25
    %v1553 = vmul.f32 %v1531, 0.25
    %v1554 = vmul.f32 %v1536, 0.25
    %v1555 = vadd.f32 %v1539, %v895
    %v1556 = vadd.f32 %v1540, %v895
    %v1557 = vadd.f32 %v1541, %v895
    %v1558 = vadd.f32 %v1542, %v895
    %v1559 = vadd.f32 %v1543, %v895
    %v1560 = vadd.f32 %v1544, %v895
    %v1561 = vadd.f32 %v1545, %v895
    %v1562 = vadd.f32 %v1546, %v895
    %v1563 = vadd.f32 %v1547, %v895
    %v1564 = vadd.f32 %v1548, %v895
    %v1565 = vadd.f32 %v1549, %v895
    %v1566 = vadd.f32 %v1550, %v895
    %v1567 = vadd.f32 %v1551, %v895
    %v1568 = vadd.f32 %v1552, %v895
    %v1569 = vadd.f32 %v1553, %v895
    %v1570 = vadd.f32 %v1554, %v895
    %1571 = vmax.xlane.f32.xlu0 %v1555
    %v1572 = vpop.xlane.xlu0 %1571
    %1573 = vmax.xlane.f32.xlu0 %v1556
    %v1574 = vpop.xlane.xlu0 %1573
    %1575 = vmax.xlane.f32.xlu0 %v1557
    %v1576 = vpop.xlane.xlu0 %1575
    %1577 = vmax.xlane.f32.xlu0 %v1558
    %v1578 = vpop.xlane.xlu0 %1577
    %1579 = vmax.xlane.f32.xlu0 %v1559
    %v1580 = vpop.xlane.xlu0 %1579
    %1581 = vmax.xlane.f32.xlu0 %v1560
    %v1582 = vpop.xlane.xlu0 %1581
    %1583 = vmax.xlane.f32.xlu0 %v1561
    %v1584 = vpop.xlane.xlu0 %1583
    %1585 = vmax.xlane.f32.xlu0 %v1562
    %v1586 = vpop.xlane.xlu0 %1585
    %1587 = vmax.xlane.f32.xlu0 %v1563
    %v1588 = vpop.xlane.xlu0 %1587
    %1589 = vmax.xlane.f32.xlu0 %v1564
    %v1590 = vpop.xlane.xlu0 %1589
    %1591 = vmax.xlane.f32.xlu0 %v1565
    %v1592 = vpop.xlane.xlu0 %1591
    %1593 = vmax.xlane.f32.xlu0 %v1566
    %v1594 = vpop.xlane.xlu0 %1593
    %1595 = vmax.xlane.f32.xlu0 %v1567
    %v1596 = vpop.xlane.xlu0 %1595
    %1597 = vmax.xlane.f32.xlu0 %v1568
    %v1598 = vpop.xlane.xlu0 %1597
    %1599 = vmax.xlane.f32.xlu0 %v1569
    %v1600 = vpop.xlane.xlu0 %1599
    %1601 = vmax.xlane.f32.xlu0 %v1570
    %v1602 = vpop.xlane.xlu0 %1601
    %v1603 = vsub.f32 %v1555, %v1572
    %v1604 = vsub.f32 %v1556, %v1574
    %v1605 = vsub.f32 %v1557, %v1576
    %v1606 = vsub.f32 %v1558, %v1578
    %v1607 = vsub.f32 %v1559, %v1580
    %v1608 = vsub.f32 %v1560, %v1582
    %v1609 = vsub.f32 %v1561, %v1584
    %v1610 = vsub.f32 %v1562, %v1586
    %v1611 = vsub.f32 %v1563, %v1588
    %v1612 = vsub.f32 %v1564, %v1590
    %v1613 = vsub.f32 %v1565, %v1592
    %v1614 = vsub.f32 %v1566, %v1594
    %v1615 = vsub.f32 %v1567, %v1596
    %v1616 = vsub.f32 %v1568, %v1598
    %v1617 = vsub.f32 %v1569, %v1600
    %v1618 = vsub.f32 %v1570, %v1602
    %v1619 = vmul.f32 %v1603, 1.442695
    %v1620 = vpow.pop %v1619
    %v1621 = vmul.f32 %v1604, 1.442695
    %v1622 = vpow.pop %v1621
    %v1623 = vmul.f32 %v1605, 1.442695
    %v1624 = vpow.pop %v1623
    %v1625 = vmul.f32 %v1606, 1.442695
    %v1626 = vpow.pop %v1625
    %v1627 = vmul.f32 %v1607, 1.442695
    %v1628 = vpow.pop %v1627
    %v1629 = vmul.f32 %v1608, 1.442695
    %v1630 = vpow.pop %v1629
    %v1631 = vmul.f32 %v1609, 1.442695
    %v1632 = vpow.pop %v1631
    %v1633 = vmul.f32 %v1610, 1.442695
    %v1634 = vpow.pop %v1633
    %v1635 = vmul.f32 %v1611, 1.442695
    %v1636 = vpow.pop %v1635
    %v1637 = vmul.f32 %v1612, 1.442695
    %v1638 = vpow.pop %v1637
    %v1639 = vmul.f32 %v1613, 1.442695
    %v1640 = vpow.pop %v1639
    %v1641 = vmul.f32 %v1614, 1.442695
    %v1642 = vpow.pop %v1641
    %v1643 = vmul.f32 %v1615, 1.442695
    %v1644 = vpow.pop %v1643
    %v1645 = vmul.f32 %v1616, 1.442695
    %v1646 = vpow.pop %v1645
    %v1647 = vmul.f32 %v1617, 1.442695
    %v1648 = vpow.pop %v1647
    %v1649 = vmul.f32 %v1618, 1.442695
    %v1650 = vpow.pop %v1649
    %1651 = vadd.xlane.f32.xlu0 %v1620
    %v1652 = vpop.xlane.xlu0 %1651
    %1653 = vadd.xlane.f32.xlu0 %v1622
    %v1654 = vpop.xlane.xlu0 %1653
    %1655 = vadd.xlane.f32.xlu0 %v1624
    %v1656 = vpop.xlane.xlu0 %1655
    %1657 = vadd.xlane.f32.xlu0 %v1626
    %v1658 = vpop.xlane.xlu0 %1657
    %1659 = vadd.xlane.f32.xlu0 %v1628
    %v1660 = vpop.xlane.xlu0 %1659
    %1661 = vadd.xlane.f32.xlu0 %v1630
    %v1662 = vpop.xlane.xlu0 %1661
    %1663 = vadd.xlane.f32.xlu0 %v1632
    %v1664 = vpop.xlane.xlu0 %1663
    %1665 = vadd.xlane.f32.xlu0 %v1634
    %v1666 = vpop.xlane.xlu0 %1665
    %1667 = vadd.xlane.f32.xlu0 %v1636
    %v1668 = vpop.xlane.xlu0 %1667
    %1669 = vadd.xlane.f32.xlu0 %v1638
    %v1670 = vpop.xlane.xlu0 %1669
    %1671 = vadd.xlane.f32.xlu0 %v1640
    %v1672 = vpop.xlane.xlu0 %1671
    %1673 = vadd.xlane.f32.xlu0 %v1642
    %v1674 = vpop.xlane.xlu0 %1673
    %1675 = vadd.xlane.f32.xlu0 %v1644
    %v1676 = vpop.xlane.xlu0 %1675
    %1677 = vadd.xlane.f32.xlu0 %v1646
    %v1678 = vpop.xlane.xlu0 %1677
    %1679 = vadd.xlane.f32.xlu0 %v1648
    %v1680 = vpop.xlane.xlu0 %1679
    %1681 = vadd.xlane.f32.xlu0 %v1650
    %v1682 = vpop.xlane.xlu0 %1681
    %v1683 = vrcp.pop %v1652
    %v1684 = vrcp.pop %v1654
    %v1685 = vrcp.pop %v1656
    %v1686 = vrcp.pop %v1658
    %v1687 = vrcp.pop %v1660
    %v1688 = vrcp.pop %v1662
    %v1689 = vrcp.pop %v1664
    %v1690 = vrcp.pop %v1666
    %v1691 = vrcp.pop %v1668
    %v1692 = vrcp.pop %v1670
    %v1693 = vrcp.pop %v1672
    %v1694 = vrcp.pop %v1674
    %v1695 = vrcp.pop %v1676
    %v1696 = vrcp.pop %v1678
    %v1697 = vrcp.pop %v1680
    %v1698 = vrcp.pop %v1682
    %v1699 = vmul.f32 %v1620, %v1683
    %v1700 = vmul.f32 %v1622, %v1684
    %v1701 = vmul.f32 %v1624, %v1685
    %v1702 = vmul.f32 %v1626, %v1686
    %v1703 = vmul.f32 %v1628, %v1687
    %v1704 = vmul.f32 %v1630, %v1688
    %v1705 = vmul.f32 %v1632, %v1689
    %v1706 = vmul.f32 %v1634, %v1690
    %v1707 = vmul.f32 %v1636, %v1691
    %v1708 = vmul.f32 %v1638, %v1692
    %v1709 = vmul.f32 %v1640, %v1693
    %v1710 = vmul.f32 %v1642, %v1694
    %v1711 = vmul.f32 %v1644, %v1695
    %v1712 = vmul.f32 %v1646, %v1696
    %v1713 = vmul.f32 %v1648, %v1697
    %v1714 = vmul.f32 %v1650, %v1698
    %s1715 = scalar_lea.vmem [#allocation11], 128
    %1716 = vst [vmem:[%s1715] sm:$0xff] %v1699
    %1717 = vst [vmem:[%s1715 + $0x8] sm:$0xff] %v1700
    %1718 = vst [vmem:[%s1715 + $0x10] sm:$0xff] %v1701
    %1719 = vst [vmem:[%s1715 + $0x18] sm:$0xff] %v1702
    %1720 = vst [vmem:[%s1715 + $0x20] sm:$0xff] %v1703
    %1721 = vst [vmem:[%s1715 + $0x28] sm:$0xff] %v1704
    %1722 = vst [vmem:[%s1715 + $0x30] sm:$0xff] %v1705
    %1723 = vst [vmem:[%s1715 + $0x38] sm:$0xff] %v1706
    %1724 = vst [vmem:[%s1715 + $0x40] sm:$0xff] %v1707
    %1725 = vst [vmem:[%s1715 + $0x48] sm:$0xff] %v1708
    %1726 = vst [vmem:[%s1715 + $0x50] sm:$0xff] %v1709
    %1727 = vst [vmem:[%s1715 + $0x58] sm:$0xff] %v1710
    %1728 = vst [vmem:[%s1715 + $0x60] sm:$0xff] %v1711
    %1729 = vst [vmem:[%s1715 + $0x68] sm:$0xff] %v1712
    %1730 = vst [vmem:[%s1715 + $0x70] sm:$0xff] %v1713
    %1731 = vst [vmem:[%s1715 + $0x78] sm:$0xff] %v1714
    %1732 = vmatprep.subr.mxu0 0.0
    %1733 = vmatpush1.msra.mxu0 %v889
    %1734 = vmatprep.subr.mxu0 0.0
    %1735 = vmatpush1.msra.mxu0 %v884
    %1736 = vmatprep.subr.mxu0 0.0
    %1737 = vmatpush1.msra.mxu0 %v879
    %1738 = vmatprep.subr.mxu0 0.0
    %1739 = vmatpush1.msra.mxu0 %v874
    %1740 = vmatprep.subr.mxu0 0.0
    %1741 = vmatpush1.msra.mxu0 %v869
    %1742 = vmatprep.subr.mxu0 0.0
    %1743 = vmatpush1.msra.mxu0 %v864
    %1744 = vmatprep.subr.mxu0 0.0
    %1745 = vmatpush1.msra.mxu0 %v859
    %1746 = vmatprep.subr.mxu0 0.0
    %1747 = vmatpush1.msra.mxu0 %v854
    %1748 = vmatprep.subr.mxu0 0.0
    %1749 = vmatpush1.msra.mxu0 %v849
    %1750 = vmatprep.subr.mxu0 0.0
    %1751 = vmatpush1.msra.mxu0 %v844
    %1752 = vmatprep.subr.mxu0 0.0
    %1753 = vmatpush1.msra.mxu0 %v839
    %1754 = vmatprep.subr.mxu0 0.0
    %1755 = vmatpush1.msra.mxu0 %v834
    %1756 = vmatprep.subr.mxu0 0.0
    %1757 = vmatpush1.msra.mxu0 %v829
    %1758 = vmatprep.subr.mxu0 0.0
    %1759 = vmatpush1.msra.mxu0 %v824
    %1760 = vmatprep.subr.mxu0 0.0
    %1761 = vmatpush1.msra.mxu0 %v819
    %1762 = vmatprep.subr.mxu0 0.0
    %1763 = vmatpush1.msra.mxu0 %v814
    %1764 = vmatprep.subr.mxu0 0.0
    %1765 = vmatpush2.msra.mxu0 0.0
    %1766 = vmatprep.subr.mxu0 0.0
    %1767 = vmatpush2.msra.mxu0 0.0
    %1768 = vmatprep.subr.mxu0 0.0
    %1769 = vmatpush2.msra.mxu0 0.0
    %1770 = vmatprep.subr.mxu0 0.0
    %1771 = vmatpush2.msra.mxu0 0.0
    %1772 = vmatprep.subr.mxu0 0.0
    %1773 = vmatpush2.msra.mxu0 0.0
    %1774 = vmatprep.subr.mxu0 0.0
    %1775 = vmatpush2.msra.mxu0 0.0
    %1776 = vmatprep.subr.mxu0 0.0
    %1777 = vmatpush2.msra.mxu0 0.0
    %1778 = vmatprep.subr.mxu0 0.0
    %1779 = vmatpush2.msra.mxu0 0.0
    %1780 = vmatprep.subr.mxu0 0.0
    %1781 = vmatpush2.msra.mxu0 0.0
    %1782 = vmatprep.subr.mxu0 0.0
    %1783 = vmatpush2.msra.mxu0 0.0
    %1784 = vmatprep.subr.mxu0 0.0
    %1785 = vmatpush2.msra.mxu0 0.0
    %1786 = vmatprep.subr.mxu0 0.0
    %1787 = vmatpush2.msra.mxu0 0.0
    %1788 = vmatprep.subr.mxu0 0.0
    %1789 = vmatpush2.msra.mxu0 0.0
    %1790 = vmatprep.subr.mxu0 0.0
    %1791 = vmatpush2.msra.mxu0 0.0
    %1792 = vmatprep.subr.mxu0 0.0
    %1793 = vmatpush2.msra.mxu0 0.0
    %1794 = vmatprep.subr.mxu0 0.0
    %1795 = vmatpush2.msra.mxu0 0.0
    %1796 = vmatprep.mubr.f32.mxu0 0.0
    %1797 = vmatmul.mubr.f32.gmra.mxu0 %v1699
    %v1798 = vpop.f32.mrf.mxu0
    %v1799 = vadd.f32 0.0, %v1798
    %v1800 = vpop.f32.mrf.mxu0
    %1801 = vmatprep.mubr.f32.mxu0 0.0
    %1802 = vmatmul.mubr.f32.gmra.mxu0 %v1700
    %v1803 = vpop.f32.mrf.mxu0
    %v1804 = vadd.f32 0.0, %v1803
    %v1805 = vpop.f32.mrf.mxu0
    %1806 = vmatprep.mubr.f32.mxu0 0.0
    %1807 = vmatmul.mubr.f32.gmra.mxu0 %v1701
    %v1808 = vpop.f32.mrf.mxu0
    %v1809 = vadd.f32 0.0, %v1808
    %v1810 = vpop.f32.mrf.mxu0
    %1811 = vmatprep.mubr.f32.mxu0 0.0
    %1812 = vmatmul.mubr.f32.gmra.mxu0 %v1702
    %v1813 = vpop.f32.mrf.mxu0
    %v1814 = vadd.f32 0.0, %v1813
    %v1815 = vpop.f32.mrf.mxu0
    %1816 = vmatprep.mubr.f32.mxu0 0.0
    %1817 = vmatmul.mubr.f32.gmra.mxu0 %v1703
    %v1818 = vpop.f32.mrf.mxu0
    %v1819 = vadd.f32 0.0, %v1818
    %v1820 = vpop.f32.mrf.mxu0
    %1821 = vmatprep.mubr.f32.mxu0 0.0
    %1822 = vmatmul.mubr.f32.gmra.mxu0 %v1704
    %v1823 = vpop.f32.mrf.mxu0
    %v1824 = vadd.f32 0.0, %v1823
    %v1825 = vpop.f32.mrf.mxu0
    %1826 = vmatprep.mubr.f32.mxu0 0.0
    %1827 = vmatmul.mubr.f32.gmra.mxu0 %v1705
    %v1828 = vpop.f32.mrf.mxu0
    %v1829 = vadd.f32 0.0, %v1828
    %v1830 = vpop.f32.mrf.mxu0
    %1831 = vmatprep.mubr.f32.mxu0 0.0
    %1832 = vmatmul.mubr.f32.gmra.mxu0 %v1706
    %v1833 = vpop.f32.mrf.mxu0
    %v1834 = vadd.f32 0.0, %v1833
    %v1835 = vpop.f32.mrf.mxu0
    %1836 = vmatprep.mubr.f32.mxu0 0.0
    %1837 = vmatmul.mubr.f32.gmra.mxu0 %v1707
    %v1838 = vpop.f32.mrf.mxu0
    %v1839 = vadd.f32 0.0, %v1838
    %v1840 = vpop.f32.mrf.mxu0
    %1841 = vmatprep.mubr.f32.mxu0 0.0
    %1842 = vmatmul.mubr.f32.gmra.mxu0 %v1708
    %v1843 = vpop.f32.mrf.mxu0
    %v1844 = vadd.f32 0.0, %v1843
    %v1845 = vpop.f32.mrf.mxu0
    %1846 = vmatprep.mubr.f32.mxu0 0.0
    %1847 = vmatmul.mubr.f32.gmra.mxu0 %v1709
    %v1848 = vpop.f32.mrf.mxu0
    %v1849 = vadd.f32 0.0, %v1848
    %v1850 = vpop.f32.mrf.mxu0
    %1851 = vmatprep.mubr.f32.mxu0 0.0
    %1852 = vmatmul.mubr.f32.gmra.mxu0 %v1710
    %v1853 = vpop.f32.mrf.mxu0
    %v1854 = vadd.f32 0.0, %v1853
    %v1855 = vpop.f32.mrf.mxu0
    %1856 = vmatprep.mubr.f32.mxu0 0.0
    %1857 = vmatmul.mubr.f32.gmra.mxu0 %v1711
    %v1858 = vpop.f32.mrf.mxu0
    %v1859 = vadd.f32 0.0, %v1858
    %v1860 = vpop.f32.mrf.mxu0
    %1861 = vmatprep.mubr.f32.mxu0 0.0
    %1862 = vmatmul.mubr.f32.gmra.mxu0 %v1712
    %v1863 = vpop.f32.mrf.mxu0
    %v1864 = vadd.f32 0.0, %v1863
    %v1865 = vpop.f32.mrf.mxu0
    %1866 = vmatprep.mubr.f32.mxu0 0.0
    %1867 = vmatmul.mubr.f32.gmra.mxu0 %v1713
    %v1868 = vpop.f32.mrf.mxu0
    %v1869 = vadd.f32 0.0, %v1868
    %v1870 = vpop.f32.mrf.mxu0
    %1871 = vmatprep.mubr.f32.mxu0 0.0
    %1872 = vmatmul.mubr.f32.gmra.mxu0 %v1714
    %v1873 = vpop.f32.mrf.mxu0
    %v1874 = vadd.f32 0.0, %v1873
    %v1875 = vpop.f32.mrf.mxu0
    %1876 = vdwg.mxu0
    %s1877 = scalar_lea.vmem [#allocation2], 128
    %1878 = vst [vmem:[%s1877] sm:$0xff] %v1799
    %1879 = vst [vmem:[%s1877 + $0x8] sm:$0xff] %v1804
    %1880 = vst [vmem:[%s1877 + $0x10] sm:$0xff] %v1809
    %1881 = vst [vmem:[%s1877 + $0x18] sm:$0xff] %v1814
    %1882 = vst [vmem:[%s1877 + $0x20] sm:$0xff] %v1819
    %1883 = vst [vmem:[%s1877 + $0x28] sm:$0xff] %v1824
    %1884 = vst [vmem:[%s1877 + $0x30] sm:$0xff] %v1829
    %1885 = vst [vmem:[%s1877 + $0x38] sm:$0xff] %v1834
    %1886 = vst [vmem:[%s1877 + $0x40] sm:$0xff] %v1839
    %1887 = vst [vmem:[%s1877 + $0x48] sm:$0xff] %v1844
    %1888 = vst [vmem:[%s1877 + $0x50] sm:$0xff] %v1849
    %1889 = vst [vmem:[%s1877 + $0x58] sm:$0xff] %v1854
    %1890 = vst [vmem:[%s1877 + $0x60] sm:$0xff] %v1859
    %1891 = vst [vmem:[%s1877 + $0x68] sm:$0xff] %v1864
    %1892 = vst [vmem:[%s1877 + $0x70] sm:$0xff] %v1869
    %1893 = vst [vmem:[%s1877 + $0x78] sm:$0xff] %v1874
    %v1894 = vld [vmem:[#allocation2] sm:$0xff]
    %v1895 = vld [vmem:[#allocation2 + $0x8] sm:$0xff]
    %v1896 = vld [vmem:[#allocation2 + $0x10] sm:$0xff]
    %v1897 = vld [vmem:[#allocation2 + $0x18] sm:$0xff]
    %v1898 = vld [vmem:[#allocation2 + $0x20] sm:$0xff]
    %v1899 = vld [vmem:[#allocation2 + $0x28] sm:$0xff]
    %v1900 = vld [vmem:[#allocation2 + $0x30] sm:$0xff]
    %v1901 = vld [vmem:[#allocation2 + $0x38] sm:$0xff]
    %v1902 = vld [vmem:[#allocation2 + $0x40] sm:$0xff]
    %v1903 = vld [vmem:[#allocation2 + $0x48] sm:$0xff]
    %v1904 = vld [vmem:[#allocation2 + $0x50] sm:$0xff]
    %v1905 = vld [vmem:[#allocation2 + $0x58] sm:$0xff]
    %v1906 = vld [vmem:[#allocation2 + $0x60] sm:$0xff]
    %v1907 = vld [vmem:[#allocation2 + $0x68] sm:$0xff]
    %v1908 = vld [vmem:[#allocation2 + $0x70] sm:$0xff]
    %v1909 = vld [vmem:[#allocation2 + $0x78] sm:$0xff]
    %v1910 = vld [vmem:[#allocation2 + $0x80] sm:$0xff]
    %v1911 = vld [vmem:[#allocation2 + $0x88] sm:$0xff]
    %v1912 = vld [vmem:[#allocation2 + $0x90] sm:$0xff]
    %v1913 = vld [vmem:[#allocation2 + $0x98] sm:$0xff]
    %v1914 = vld [vmem:[#allocation2 + $0xa0] sm:$0xff]
    %v1915 = vld [vmem:[#allocation2 + $0xa8] sm:$0xff]
    %v1916 = vld [vmem:[#allocation2 + $0xb0] sm:$0xff]
    %v1917 = vld [vmem:[#allocation2 + $0xb8] sm:$0xff]
    %v1918 = vld [vmem:[#allocation2 + $0xc0] sm:$0xff]
    %v1919 = vld [vmem:[#allocation2 + $0xc8] sm:$0xff]
    %v1920 = vld [vmem:[#allocation2 + $0xd0] sm:$0xff]
    %v1921 = vld [vmem:[#allocation2 + $0xd8] sm:$0xff]
    %v1922 = vld [vmem:[#allocation2 + $0xe0] sm:$0xff]
    %v1923 = vld [vmem:[#allocation2 + $0xe8] sm:$0xff]
    %v1924 = vld [vmem:[#allocation2 + $0xf0] sm:$0xff]
    %v1925 = vld [vmem:[#allocation2 + $0xf8] sm:$0xff]
    %v1926 = vadd.f32 %v204, %v1894
    %v1927 = vadd.f32 %v209, %v1895
    %v1928 = vadd.f32 %v214, %v1896
    %v1929 = vadd.f32 %v219, %v1897
    %v1930 = vadd.f32 %v224, %v1898
    %v1931 = vadd.f32 %v229, %v1899
    %v1932 = vadd.f32 %v234, %v1900
    %v1933 = vadd.f32 %v239, %v1901
    %v1934 = vadd.f32 %v244, %v1902
    %v1935 = vadd.f32 %v249, %v1903
    %v1936 = vadd.f32 %v254, %v1904
    %v1937 = vadd.f32 %v259, %v1905
    %v1938 = vadd.f32 %v264, %v1906
    %v1939 = vadd.f32 %v269, %v1907
    %v1940 = vadd.f32 %v274, %v1908
    %v1941 = vadd.f32 %v279, %v1909
    %v1942 = vadd.f32 %v284, %v1910
    %v1943 = vadd.f32 %v289, %v1911
    %v1944 = vadd.f32 %v294, %v1912
    %v1945 = vadd.f32 %v299, %v1913
    %v1946 = vadd.f32 %v304, %v1914
    %v1947 = vadd.f32 %v309, %v1915
    %v1948 = vadd.f32 %v314, %v1916
    %v1949 = vadd.f32 %v319, %v1917
    %v1950 = vadd.f32 %v324, %v1918
    %v1951 = vadd.f32 %v329, %v1919
    %v1952 = vadd.f32 %v334, %v1920
    %v1953 = vadd.f32 %v339, %v1921
    %v1954 = vadd.f32 %v344, %v1922
    %v1955 = vadd.f32 %v349, %v1923
    %v1956 = vadd.f32 %v354, %v1924
    %v1957 = vadd.f32 %v359, %v1925
    %v1958 = vld [vmem:[#allocation9] sm:$0xff]
    %v1959 = vld [vmem:[#allocation9 + $0x8] sm:$0xff]
    %v1960 = vld [vmem:[#allocation9 + $0x10] sm:$0xff]
    %v1961 = vld [vmem:[#allocation9 + $0x18] sm:$0xff]
    %v1962 = vld [vmem:[#allocation9 + $0x20] sm:$0xff]
    %v1963 = vld [vmem:[#allocation9 + $0x28] sm:$0xff]
    %v1964 = vld [vmem:[#allocation9 + $0x30] sm:$0xff]
    %v1965 = vld [vmem:[#allocation9 + $0x38] sm:$0xff]
    %v1966 = vld [vmem:[#allocation9 + $0x40] sm:$0xff]
    %v1967 = vld [vmem:[#allocation9 + $0x48] sm:$0xff]
    %v1968 = vld [vmem:[#allocation9 + $0x50] sm:$0xff]
    %v1969 = vld [vmem:[#allocation9 + $0x58] sm:$0xff]
    %v1970 = vld [vmem:[#allocation9 + $0x60] sm:$0xff]
    %v1971 = vld [vmem:[#allocation9 + $0x68] sm:$0xff]
    %v1972 = vld [vmem:[#allocation9 + $0x70] sm:$0xff]
    %v1973 = vld [vmem:[#allocation9 + $0x78] sm:$0xff]
    %v1974 = vld [vmem:[%s5] sm:$0x1]
    %v1976 = vlaneseq
    %v1977 = vshrl.u32 %v1976, 7
    %v1978 = vsub.s32 0, %v1977
    %v1979 = vrot.slane %v1974, %v1978
    %1981 = vmatprep.subr.mxu0 0.0
    %1982 = vmatpush1.msra.mxu0 %v1973
    %1983 = vmatprep.subr.mxu0 0.0
    %1984 = vmatpush1.msra.mxu0 %v1972
    %1985 = vmatprep.subr.mxu0 0.0
    %1986 = vmatpush1.msra.mxu0 %v1971
    %1987 = vmatprep.subr.mxu0 0.0
    %1988 = vmatpush1.msra.mxu0 %v1970
    %1989 = vmatprep.subr.mxu0 0.0
    %1990 = vmatpush1.msra.mxu0 %v1969
    %1991 = vmatprep.subr.mxu0 0.0
    %1992 = vmatpush1.msra.mxu0 %v1968
    %1993 = vmatprep.subr.mxu0 0.0
    %1994 = vmatpush1.msra.mxu0 %v1967
    %1995 = vmatprep.subr.mxu0 0.0
    %1996 = vmatpush1.msra.mxu0 %v1966
    %1997 = vmatprep.subr.mxu0 0.0
    %1998 = vmatpush1.msra.mxu0 %v1965
    %1999 = vmatprep.subr.mxu0 0.0
    %2000 = vmatpush1.msra.mxu0 %v1964
    %2001 = vmatprep.subr.mxu0 0.0
    %2002 = vmatpush1.msra.mxu0 %v1963
    %2003 = vmatprep.subr.mxu0 0.0
    %2004 = vmatpush1.msra.mxu0 %v1962
    %2005 = vmatprep.subr.mxu0 0.0
    %2006 = vmatpush1.msra.mxu0 %v1961
    %2007 = vmatprep.subr.mxu0 0.0
    %2008 = vmatpush1.msra.mxu0 %v1960
    %2009 = vmatprep.subr.mxu0 0.0
    %2010 = vmatpush1.msra.mxu0 %v1959
    %2011 = vmatprep.subr.mxu0 0.0
    %2012 = vmatpush1.msra.mxu0 %v1958
    %2013 = vmatprep.subr.mxu0 0.0
    %2014 = vmatpush2.msra.mxu0 0.0
    %2015 = vmatprep.subr.mxu0 0.0
    %2016 = vmatpush2.msra.mxu0 0.0
    %2017 = vmatprep.subr.mxu0 0.0
    %2018 = vmatpush2.msra.mxu0 0.0
    %2019 = vmatprep.subr.mxu0 0.0
    %2020 = vmatpush2.msra.mxu0 0.0
    %2021 = vmatprep.subr.mxu0 0.0
    %2022 = vmatpush2.msra.mxu0 0.0
    %2023 = vmatprep.subr.mxu0 0.0
    %2024 = vmatpush2.msra.mxu0 0.0
    %2025 = vmatprep.subr.mxu0 0.0
    %2026 = vmatpush2.msra.mxu0 0.0
    %2027 = vmatprep.subr.mxu0 0.0
    %2028 = vmatpush2.msra.mxu0 0.0
    %2029 = vmatprep.subr.mxu0 0.0
    %2030 = vmatpush2.msra.mxu0 0.0
    %2031 = vmatprep.subr.mxu0 0.0
    %2032 = vmatpush2.msra.mxu0 0.0
    %2033 = vmatprep.subr.mxu0 0.0
    %2034 = vmatpush2.msra.mxu0 0.0
    %2035 = vmatprep.subr.mxu0 0.0
    %2036 = vmatpush2.msra.mxu0 0.0
    %2037 = vmatprep.subr.mxu0 0.0
    %2038 = vmatpush2.msra.mxu0 0.0
    %2039 = vmatprep.subr.mxu0 0.0
    %2040 = vmatpush2.msra.mxu0 0.0
    %2041 = vmatprep.subr.mxu0 0.0
    %2042 = vmatpush2.msra.mxu0 0.0
    %2043 = vmatprep.subr.mxu0 0.0
    %2044 = vmatpush2.msra.mxu0 0.0
    %2045 = vmatprep.mubr.f32.mxu0 0.0
    %2046 = vmatmul.mubr.f32.gmra.mxu0 %v1926
    %v2047 = vpop.f32.mrf.mxu0
    %v2048 = vadd.f32 %v1979, %v2047
    %v2049 = vpop.f32.mrf.mxu0
    %2050 = vmatprep.mubr.f32.mxu0 0.0
    %2051 = vmatmul.mubr.f32.gmra.mxu0 %v1927
    %v2052 = vpop.f32.mrf.mxu0
    %v2053 = vadd.f32 %v1979, %v2052
    %v2054 = vpop.f32.mrf.mxu0
    %2055 = vmatprep.mubr.f32.mxu0 0.0
    %2056 = vmatmul.mubr.f32.gmra.mxu0 %v1928
    %v2057 = vpop.f32.mrf.mxu0
    %v2058 = vadd.f32 %v1979, %v2057
    %v2059 = vpop.f32.mrf.mxu0
    %2060 = vmatprep.mubr.f32.mxu0 0.0
    %2061 = vmatmul.mubr.f32.gmra.mxu0 %v1929
    %v2062 = vpop.f32.mrf.mxu0
    %v2063 = vadd.f32 %v1979, %v2062
    %v2064 = vpop.f32.mrf.mxu0
    %2065 = vmatprep.mubr.f32.mxu0 0.0
    %2066 = vmatmul.mubr.f32.gmra.mxu0 %v1930
    %v2067 = vpop.f32.mrf.mxu0
    %v2068 = vadd.f32 %v1979, %v2067
    %v2069 = vpop.f32.mrf.mxu0
    %2070 = vmatprep.mubr.f32.mxu0 0.0
    %2071 = vmatmul.mubr.f32.gmra.mxu0 %v1931
    %v2072 = vpop.f32.mrf.mxu0
    %v2073 = vadd.f32 %v1979, %v2072
    %v2074 = vpop.f32.mrf.mxu0
    %2075 = vmatprep.mubr.f32.mxu0 0.0
    %2076 = vmatmul.mubr.f32.gmra.mxu0 %v1932
    %v2077 = vpop.f32.mrf.mxu0
    %v2078 = vadd.f32 %v1979, %v2077
    %v2079 = vpop.f32.mrf.mxu0
    %2080 = vmatprep.mubr.f32.mxu0 0.0
    %2081 = vmatmul.mubr.f32.gmra.mxu0 %v1933
    %v2082 = vpop.f32.mrf.mxu0
    %v2083 = vadd.f32 %v1979, %v2082
    %v2084 = vpop.f32.mrf.mxu0
    %2085 = vmatprep.mubr.f32.mxu0 0.0
    %2086 = vmatmul.mubr.f32.gmra.mxu0 %v1934
    %v2087 = vpop.f32.mrf.mxu0
    %v2088 = vadd.f32 %v1979, %v2087
    %v2089 = vpop.f32.mrf.mxu0
    %2090 = vmatprep.mubr.f32.mxu0 0.0
    %2091 = vmatmul.mubr.f32.gmra.mxu0 %v1935
    %v2092 = vpop.f32.mrf.mxu0
    %v2093 = vadd.f32 %v1979, %v2092
    %v2094 = vpop.f32.mrf.mxu0
    %2095 = vmatprep.mubr.f32.mxu0 0.0
    %2096 = vmatmul.mubr.f32.gmra.mxu0 %v1936
    %v2097 = vpop.f32.mrf.mxu0
    %v2098 = vadd.f32 %v1979, %v2097
    %v2099 = vpop.f32.mrf.mxu0
    %2100 = vmatprep.mubr.f32.mxu0 0.0
    %2101 = vmatmul.mubr.f32.gmra.mxu0 %v1937
    %v2102 = vpop.f32.mrf.mxu0
    %v2103 = vadd.f32 %v1979, %v2102
    %v2104 = vpop.f32.mrf.mxu0
    %2105 = vmatprep.mubr.f32.mxu0 0.0
    %2106 = vmatmul.mubr.f32.gmra.mxu0 %v1938
    %v2107 = vpop.f32.mrf.mxu0
    %v2108 = vadd.f32 %v1979, %v2107
    %v2109 = vpop.f32.mrf.mxu0
    %2110 = vmatprep.mubr.f32.mxu0 0.0
    %2111 = vmatmul.mubr.f32.gmra.mxu0 %v1939
    %v2112 = vpop.f32.mrf.mxu0
    %v2113 = vadd.f32 %v1979, %v2112
    %v2114 = vpop.f32.mrf.mxu0
    %2115 = vmatprep.mubr.f32.mxu0 0.0
    %2116 = vmatmul.mubr.f32.gmra.mxu0 %v1940
    %v2117 = vpop.f32.mrf.mxu0
    %v2118 = vadd.f32 %v1979, %v2117
    %v2119 = vpop.f32.mrf.mxu0
    %2120 = vmatprep.mubr.f32.mxu0 0.0
    %2121 = vmatmul.mubr.f32.gmra.mxu0 %v1941
    %v2122 = vpop.f32.mrf.mxu0
    %v2123 = vadd.f32 %v1979, %v2122
    %v2124 = vpop.f32.mrf.mxu0
    %2125 = vmatprep.mubr.f32.mxu0 0.0
    %2126 = vmatmul.mubr.f32.gmra.mxu0 %v1942
    %v2127 = vpop.f32.mrf.mxu0
    %v2128 = vadd.f32 %v1979, %v2127
    %v2129 = vpop.f32.mrf.mxu0
    %2130 = vmatprep.mubr.f32.mxu0 0.0
    %2131 = vmatmul.mubr.f32.gmra.mxu0 %v1943
    %v2132 = vpop.f32.mrf.mxu0
    %v2133 = vadd.f32 %v1979, %v2132
    %v2134 = vpop.f32.mrf.mxu0
    %2135 = vmatprep.mubr.f32.mxu0 0.0
    %2136 = vmatmul.mubr.f32.gmra.mxu0 %v1944
    %v2137 = vpop.f32.mrf.mxu0
    %v2138 = vadd.f32 %v1979, %v2137
    %v2139 = vpop.f32.mrf.mxu0
    %2140 = vmatprep.mubr.f32.mxu0 0.0
    %2141 = vmatmul.mubr.f32.gmra.mxu0 %v1945
    %v2142 = vpop.f32.mrf.mxu0
    %v2143 = vadd.f32 %v1979, %v2142
    %v2144 = vpop.f32.mrf.mxu0
    %2145 = vmatprep.mubr.f32.mxu0 0.0
    %2146 = vmatmul.mubr.f32.gmra.mxu0 %v1946
    %v2147 = vpop.f32.mrf.mxu0
    %v2148 = vadd.f32 %v1979, %v2147
    %v2149 = vpop.f32.mrf.mxu0
    %2150 = vmatprep.mubr.f32.mxu0 0.0
    %2151 = vmatmul.mubr.f32.gmra.mxu0 %v1947
    %v2152 = vpop.f32.mrf.mxu0
    %v2153 = vadd.f32 %v1979, %v2152
    %v2154 = vpop.f32.mrf.mxu0
    %2155 = vmatprep.mubr.f32.mxu0 0.0
    %2156 = vmatmul.mubr.f32.gmra.mxu0 %v1948
    %v2157 = vpop.f32.mrf.mxu0
    %v2158 = vadd.f32 %v1979, %v2157
    %v2159 = vpop.f32.mrf.mxu0
    %2160 = vmatprep.mubr.f32.mxu0 0.0
    %2161 = vmatmul.mubr.f32.gmra.mxu0 %v1949
    %v2162 = vpop.f32.mrf.mxu0
    %v2163 = vadd.f32 %v1979, %v2162
    %v2164 = vpop.f32.mrf.mxu0
    %2165 = vmatprep.mubr.f32.mxu0 0.0
    %2166 = vmatmul.mubr.f32.gmra.mxu0 %v1950
    %v2167 = vpop.f32.mrf.mxu0
    %v2168 = vadd.f32 %v1979, %v2167
    %v2169 = vpop.f32.mrf.mxu0
    %2170 = vmatprep.mubr.f32.mxu0 0.0
    %2171 = vmatmul.mubr.f32.gmra.mxu0 %v1951
    %v2172 = vpop.f32.mrf.mxu0
    %v2173 = vadd.f32 %v1979, %v2172
    %v2174 = vpop.f32.mrf.mxu0
    %2175 = vmatprep.mubr.f32.mxu0 0.0
    %2176 = vmatmul.mubr.f32.gmra.mxu0 %v1952
    %v2177 = vpop.f32.mrf.mxu0
    %v2178 = vadd.f32 %v1979, %v2177
    %v2179 = vpop.f32.mrf.mxu0
    %2180 = vmatprep.mubr.f32.mxu0 0.0
    %2181 = vmatmul.mubr.f32.gmra.mxu0 %v1953
    %v2182 = vpop.f32.mrf.mxu0
    %v2183 = vadd.f32 %v1979, %v2182
    %v2184 = vpop.f32.mrf.mxu0
    %2185 = vmatprep.mubr.f32.mxu0 0.0
    %2186 = vmatmul.mubr.f32.gmra.mxu0 %v1954
    %v2187 = vpop.f32.mrf.mxu0
    %v2188 = vadd.f32 %v1979, %v2187
    %v2189 = vpop.f32.mrf.mxu0
    %2190 = vmatprep.mubr.f32.mxu0 0.0
    %2191 = vmatmul.mubr.f32.gmra.mxu0 %v1955
    %v2192 = vpop.f32.mrf.mxu0
    %v2193 = vadd.f32 %v1979, %v2192
    %v2194 = vpop.f32.mrf.mxu0
    %2195 = vmatprep.mubr.f32.mxu0 0.0
    %2196 = vmatmul.mubr.f32.gmra.mxu0 %v1956
    %v2197 = vpop.f32.mrf.mxu0
    %v2198 = vadd.f32 %v1979, %v2197
    %v2199 = vpop.f32.mrf.mxu0
    %2200 = vmatprep.mubr.f32.mxu0 0.0
    %2201 = vmatmul.mubr.f32.gmra.mxu0 %v1957
    %v2202 = vpop.f32.mrf.mxu0
    %v2203 = vadd.f32 %v1979, %v2202
    %v2204 = vpop.f32.mrf.mxu0
    %2205 = vdwg.mxu0
    %2206 = vst [vmem:[#allocation12] sm:$0xff] %v2048
    %2207 = vst [vmem:[#allocation12 + $0x8] sm:$0xff] %v2053
    %2208 = vst [vmem:[#allocation12 + $0x10] sm:$0xff] %v2058
    %2209 = vst [vmem:[#allocation12 + $0x18] sm:$0xff] %v2063
    %2210 = vst [vmem:[#allocation12 + $0x20] sm:$0xff] %v2068
    %2211 = vst [vmem:[#allocation12 + $0x28] sm:$0xff] %v2073
    %2212 = vst [vmem:[#allocation12 + $0x30] sm:$0xff] %v2078
    %2213 = vst [vmem:[#allocation12 + $0x38] sm:$0xff] %v2083
    %2214 = vst [vmem:[#allocation12 + $0x40] sm:$0xff] %v2088
    %2215 = vst [vmem:[#allocation12 + $0x48] sm:$0xff] %v2093
    %2216 = vst [vmem:[#allocation12 + $0x50] sm:$0xff] %v2098
    %2217 = vst [vmem:[#allocation12 + $0x58] sm:$0xff] %v2103
    %2218 = vst [vmem:[#allocation12 + $0x60] sm:$0xff] %v2108
    %2219 = vst [vmem:[#allocation12 + $0x68] sm:$0xff] %v2113
    %2220 = vst [vmem:[#allocation12 + $0x70] sm:$0xff] %v2118
    %2221 = vst [vmem:[#allocation12 + $0x78] sm:$0xff] %v2123
    %2222 = vst [vmem:[#allocation12 + $0x80] sm:$0xff] %v2128
    %2223 = vst [vmem:[#allocation12 + $0x88] sm:$0xff] %v2133
    %2224 = vst [vmem:[#allocation12 + $0x90] sm:$0xff] %v2138
    %2225 = vst [vmem:[#allocation12 + $0x98] sm:$0xff] %v2143
    %2226 = vst [vmem:[#allocation12 + $0xa0] sm:$0xff] %v2148
    %2227 = vst [vmem:[#allocation12 + $0xa8] sm:$0xff] %v2153
    %2228 = vst [vmem:[#allocation12 + $0xb0] sm:$0xff] %v2158
    %2229 = vst [vmem:[#allocation12 + $0xb8] sm:$0xff] %v2163
    %2230 = vst [vmem:[#allocation12 + $0xc0] sm:$0xff] %v2168
    %2231 = vst [vmem:[#allocation12 + $0xc8] sm:$0xff] %v2173
    %2232 = vst [vmem:[#allocation12 + $0xd0] sm:$0xff] %v2178
    %2233 = vst [vmem:[#allocation12 + $0xd8] sm:$0xff] %v2183
    %2234 = vst [vmem:[#allocation12 + $0xe0] sm:$0xff] %v2188
    %2235 = vst [vmem:[#allocation12 + $0xe8] sm:$0xff] %v2193
    %2236 = vst [vmem:[#allocation12 + $0xf0] sm:$0xff] %v2198
    %2237 = vst [vmem:[#allocation12 + $0xf8] sm:$0xff] %v2203
    // Predicated region
    $region42: #{tpu_custom_call.1} parent=1 // pred_check
      _
    $region43: #{tpu_custom_call.1} parent=1 // pred_check_branch
      %2239 = sbr.rel (0) target = $region45
    $region44: #{tpu_custom_call.1} parent=1 // pred_region
      %s2241 = ssub.s32 4096, 4096
      %2242 = vsyncadd [#allocation5], %s2241
      %s2243 = sshll.u32 [#allocation11], 4
      %s2244 = int_to_ptr.vmem [resolvable:$true] %s2243
      %2249 = dma.vmem_to_hbm [thread:$0]  %s2244, 4096, %s6, [#allocation5], 128, 128, 8
    $region45: #{tpu_custom_call.1} parent=1 // pred_fallthru
      _
    // Predicated region
    $region46: #{tpu_custom_call.1} parent=1 // pred_check
      _
    $region47: #{tpu_custom_call.1} parent=1 // pred_check_branch
      %2251 = sbr.rel (0) target = $region49
    $region48: #{tpu_custom_call.1} parent=1 // pred_region
      %s2253 = ssub.s32 4096, 4096
      %2254 = vsyncadd [#allocation13], %s2253
      %s2255 = sshll.u32 [#allocation12], 4
      %s2256 = int_to_ptr.vmem [resolvable:$true] %s2255
      %2261 = dma.vmem_to_hbm [thread:$0]  %s2256, 4096, %s7, [#allocation13], 128, 128, 8
    $region49: #{tpu_custom_call.1} parent=1 // pred_fallthru
      _
    // Predicated region
    $region50: #{tpu_custom_call.1} parent=1 // pred_check
      _
    $region51: #{tpu_custom_call.1} parent=1 // pred_check_branch
      %2263 = sbr.rel (0) target = $region53
    $region52: #{tpu_custom_call.1} parent=1 // pred_region
      %2264 = dma.done [#allocation5], 4096
    $region53: #{tpu_custom_call.1} parent=1 // pred_fallthru
      _
    // Predicated region
    $region54: #{tpu_custom_call.1} parent=1 // pred_check
      _
    $region55: #{tpu_custom_call.1} parent=1 // pred_check_branch
      %2266 = sbr.rel (0) target = $region57
    $region56: #{tpu_custom_call.1} parent=1 // pred_region
      %2267 = dma.done [#allocation13], 4096
    $region57: #{tpu_custom_call.1} parent=1 // pred_fallthru
      _
    %2268 = vsyncpa [#allocation4], 1
    %2269 = vsyncpa [#allocation7], 1
    %2270 = vsyncpa [#allocation10], 1
    %2271 = vsyncpa [#allocation5], 1
    %2272 = vsyncpa [#allocation13], 1

</llo_original>
